<compile_context>
chip_gen: v7x
topology: tpu7x:2x2x1
jax: 0.10.0
libtpu: 0.0.40
codegen_flags: <defaults>
</compile_context>

<pallas_src>
import functools

import numpy as np
import jax
import jax.numpy as jnp
from jax.experimental import pallas as pl
from jax.experimental.pallas import tpu as pltpu

SR = 16000.0
N_FFT = 256              # small demo config; module asserts n_fft % hop_len == 0
HOP_LEN = 64
TOP_DB = 80.0
AMIN = 1e-10             # torchaudio amplitude_to_DB default (amplitude domain)
MATMUL_DTYPE = jnp.bfloat16   # jnp.float32 for exact parity (slower: emulated MXU)

N_FREQS = N_FFT // 2 + 1
TOP_DB_POW = 10.0 ** (-TOP_DB / 10.0)   # top_db threshold factor in power domain


def _round_up(x, m):
    return -(-x // m) * m


# ----------------------- deterministic buffer construction -----------------------
def _a_weighting_db(sr, n_fft, top_db):
    # librosa.fft_frequencies + librosa.A_weighting(min_db=-top_db)
    freqs = np.linspace(0.0, sr / 2.0, n_fft // 2 + 1)
    f_sq = freqs ** 2.0
    const = np.array([12194.217, 20.598997, 107.65265, 737.86223]) ** 2.0
    with np.errstate(divide="ignore"):
        w = 2.0 + 20.0 * (
            np.log10(const[0])
            + 2.0 * np.log10(f_sq)
            - np.log10(f_sq + const[0])
            - np.log10(f_sq + const[1])
            - 0.5 * np.log10(f_sq + const[2])
            - 0.5 * np.log10(f_sq + const[3])
        )
    return np.maximum(-top_db, w)


def _build_constants(sr, n_fft, top_db, matmul_dtype):
    """Packed Hann-folded DFT matrix and linear-power A-weighting.

    DFT layout (n_fft lanes): lane k (k = 0..n/2)      = Hann*cos, bin k
                              lane n/2+b (b = 1..n/2-1) = Hann*sin, bin b
    A-weighting (1, n_fft): 10**(A_db/10) on lanes 0..n/2, zero elsewhere.
    """
    n_freqs = n_fft // 2 + 1
    half = n_fft // 2
    n = np.arange(n_fft)
    hann = 0.5 - 0.5 * np.cos(2.0 * np.pi * n / n_fft)           # periodic Hann
    ang = 2.0 * np.pi * np.outer(n, np.arange(n_freqs)) / n_fft  # (n_fft, n_freqs)
    dft = np.zeros((n_fft, n_fft), np.float32)
    dft[:, :n_freqs] = hann[:, None] * np.cos(ang)               # cos bins 0..half
    dft[:, n_freqs:] = hann[:, None] * np.sin(ang[:, 1:half])    # sin bins 1..half-1
    aw = np.zeros((1, n_fft), np.float32)
    aw[0, :n_freqs] = 10.0 ** (_a_weighting_db(sr, n_fft, top_db) / 10.0)
    return jnp.asarray(dft, dtype=matmul_dtype), jnp.asarray(aw)


# --------------------------------- Pallas kernels ---------------------------------
def _power_bins(main_ref, tail_ref, dft_ref):
    """Assemble overlapping frames from hop-chunks, return per-bin power (tf, n_fft).

    Lane k (k <= n_fft//2) holds |X_k|^2; lanes above n_fft//2 hold duplicates of
    bins 1..n_fft//2-1 (zero-weighted / harmless for the max downstream).
    """
    tf, hop = main_ref.shape
    n_fft = dft_ref.shape[0]
    half = n_fft // 2
    steps = n_fft // hop

    chunks = jnp.concatenate([main_ref[...], tail_ref[...]], axis=0)   # (tf+8, hop)
    # frame r = chunks[r : r+steps] laid out along lanes: the hop overlap is
    # duplicated in VMEM/vregs instead of HBM.
    frames = jnp.concatenate([chunks[j:j + tf, :] for j in range(steps)], axis=1)
    frames = frames.astype(dft_ref.dtype)

    spec = jnp.dot(frames, dft_ref[...], preferred_element_type=jnp.float32)
    s2 = spec * spec
    # Fold the sin half onto the cos half (aligned 128-lane slices).
    folded = s2 + jnp.concatenate([s2[:, half:], s2[:, :half]], axis=1)
    lane = jax.lax.broadcasted_iota(jnp.int32, s2.shape, 1)
    # DC and Nyquist have no sine partner; their fold partner is the other cosine
    # lane, so keep the raw square there.
    return jnp.where((lane == 0) | (lane == half), s2, folded)


def _tile_max_kernel(main_ref, tail_ref, dft_ref, max_ref, *, n_frames):
    """Pass 1: per-(item, tile) max of raw power for the per-item top_db clamp."""
    tf = main_ref.shape[0]
    p = _power_bins(main_ref, tail_ref, dft_ref)
    if n_frames % tf != 0:
        # Frame-padding rows read reflect-pad audio and would bias the max.
        # Powers are >= 0, so 0-masking the padded rows is exact.
        row = jax.lax.broadcasted_iota(jnp.int32, p.shape, 0) + pl.program_id(1) * tf
        p = jnp.where(row < n_frames, p, 0.0)
    max_ref[...] = jnp.full(max_ref.shape, jnp.max(p), jnp.float32)


def _loudness_kernel(main_ref, tail_ref, dft_ref, aw_ref, thr_ref, out_ref):
    """Pass 2: top_db clamp (per-item threshold), A-weighting, mean over frequency."""
    n_fft = dft_ref.shape[0]
    p = _power_bins(main_ref, tail_ref, dft_ref)
    # max(p, thr) == clamping x_db at (item_max_db - top_db) and at 20*log10(amin).
    p = jnp.maximum(p, thr_ref[pl.program_id(0)])
    # 10 ** ((x_db + A_db) / 20) == sqrt(p * 10**(A_db/10)); duplicate lanes have
    # aw == 0 and drop out, so the mean over n_fft//2+1 bins is exact.
    amp = jnp.sqrt(p * aw_ref[...])
    out_ref[...] = jnp.sum(amp, axis=-1, keepdims=True) * (1.0 / (n_fft // 2 + 1))
    # TODO(synk): relayout the per-row means into a lane-dense (..,128) block (or
    # fold sqrt(aw)/n_freqs into a narrow reduction matmul) to avoid the masked
    # (tf, 1) column store; output bytes are tiny so this is a minor lever here.


# ----------------------------------- wrapper -------------------------------------
@functools.partial(jax.jit, static_argnames=("hop_len", "tile_frames"))
def loudness_extractor(x, dft, aw_pow, *, hop_len=HOP_LEN, tile_frames=2048):
    """Matches LoudnessExtractor.forward for x of shape (B, T)."""
    assert x.ndim == 2
    B, T = x.shape
    n_fft = dft.shape[0]
    assert n_fft % hop_len == 0, "n_fft must be divisible by hop_len"
    pad = n_fft // 2
    assert T > pad, "reflect padding needs T > n_fft // 2"
    n_frames = 1 + T // hop_len

    # Frame-row tiling.  tile_frames is the per-generation tunable; with the
    # packed n_fft-wide DFT a 2048-frame f32 working set is ~12 MiB (demo n_fft),
    # well under the 48 MiB cap chosen so v7x's 64 MiB physical VMEM also fits.
    tf = min(_round_up(tile_frames, 8), _round_up(n_frames, 8))
    padded_frames = _round_up(n_frames, tf)
    nt = padded_frames // tf

    # Reflect pad (torch.stft center=True, pad_mode='reflect'), then zero-pad so
    # every tile's main chunk block and its 8-chunk aligned tail halo are in bounds.
    n_chunks = max(nt * tf + 8, -(-(T + n_fft) // hop_len))
    n_chunks = _round_up(n_chunks, 8)
    xp = jnp.pad(x.astype(jnp.float32), ((0, 0), (pad, pad)), mode="reflect")
    xp = jnp.pad(xp, ((0, 0), (0, n_chunks * hop_len - xp.shape[1])))
    xc = xp.reshape(B, n_chunks, hop_len)        # raw audio, streamed once per pass

    cparams = pltpu.CompilerParams(
        # (batch, frame-tiles): both independent -> >=2 megacore steps on v7x
        # whenever B >= 2 (no effect on single-TC v5e/v6e).
        dimension_semantics=("parallel", "parallel"),
        vmem_limit_bytes=48 * 1024 * 1024,
    )

    main_spec = pl.BlockSpec((None, tf, hop_len), lambda b, i: (b, i, 0))
    tail_spec = pl.BlockSpec((None, 8, hop_len),
                             lambda b, i: (b, (i + 1) * (tf // 8), 0))
    dft_spec = pl.BlockSpec((n_fft, n_fft), lambda b, i: (0, 0))   # VMEM-resident

    # Pass 1: per-(item, tile) max of raw power -> per-item top_db threshold.
    tile_max = pl.pallas_call(
        functools.partial(_tile_max_kernel, n_frames=n_frames),
        out_shape=jax.ShapeDtypeStruct((B, nt, 8, 128), jnp.float32),
        grid=(B, nt),
        in_specs=[main_spec, tail_spec, dft_spec],
        out_specs=pl.BlockSpec((None, None, 8, 128), lambda b, i: (b, i, 0, 0)),
        compiler_params=cparams,
    )(xc, xc, dft)
    max_p = jnp.max(tile_max, axis=(1, 2, 3))                       # (B,)
    # amin clamp commutes with the max -> applied to the scalar, not per element.
    thr = jnp.maximum(max_p * TOP_DB_POW, AMIN * AMIN).astype(jnp.float32)

    # Pass 2: A-weighted loudness (mean over frequency) per frame.
    mean_amp = pl.pallas_call(
        _loudness_kernel,
        out_shape=jax.ShapeDtypeStruct((B, padded_frames, 1), jnp.float32),
        grid=(B, nt),
        in_specs=[
            main_spec,
            tail_spec,
            dft_spec,
            pl.BlockSpec((1, n_fft), lambda b, i: (0, 0)),          # A-weighting, resident
            pl.BlockSpec(memory_space=pltpu.MemorySpace.SMEM),      # per-item threshold scalars
        ],
        out_specs=pl.BlockSpec((None, tf, 1), lambda b, i: (b, i, 0)),
        compiler_params=cparams,
    )(xc, xc, dft, aw_pow, thr)

    y = mean_amp[:, :n_frames, 0]                                   # (B, n_frames)

    # Final AmplitudeToDB on the tiny (B, n_frames) result; for 2-D input
    # torchaudio clamps against a single global max.
    y_db = 20.0 * jnp.log10(jnp.maximum(y, AMIN))
    return jnp.maximum(y_db, jnp.max(y_db) - TOP_DB)


if __name__ == "__main__":
    assert N_FFT % HOP_LEN == 0, "n_fft must be divisible by hop_len"

    key = jax.random.PRNGKey(0)
    B, T = 2, 1024
    x = 0.1 * jax.random.normal(key, (B, T), dtype=jnp.float32)

    dft, aw_pow = _build_constants(SR, N_FFT, TOP_DB, MATMUL_DTYPE)
    out = loudness_extractor(x, dft, aw_pow, hop_len=HOP_LEN)
    out = jax.block_until_ready(out)

    assert out.shape == (B, 1 + T // HOP_LEN), out.shape
    assert bool(jnp.all(jnp.isfinite(out)))
    print("KERNEL_OK")
</pallas_src>

<mosaic_0001>
module attributes {stable_mosaic.version = 11 : i64} {
  func.func @_tile_max_kernel(%arg0: i32, %arg1: i32, %arg2: memref<1x24x64xf32, #tpu.memory_space<vmem>>, %arg3: memref<1x8x64xf32, #tpu.memory_space<vmem>>, %arg4: memref<256x256xbf16, #tpu.memory_space<vmem>>, %arg5: memref<1x1x8x128xf32, #tpu.memory_space<vmem>>) attributes {dimension_semantics = [#tpu.dimension_semantics<parallel>, #tpu.dimension_semantics<parallel>], iteration_bounds = array<i64: 2, 1>, scalar_prefetch = 0 : i64, scratch_operands = 0 : i64, tpu.core_type = #tpu.core_type<tc>, window_params = [{transform_indices = @transform_0, window_bounds = array<i64: 1, 24, 64>}, {transform_indices = @transform_1, window_bounds = array<i64: 1, 8, 64>}, {pipeline_mode = #tpu.pipeline_mode<synchronous>, transform_indices = @transform_2, window_bounds = array<i64: 256, 256>}, {transform_indices = @transform_3, window_bounds = array<i64: 1, 1, 8, 128>}]} {
    %c0 = arith.constant 0 : index
    %c0_0 = arith.constant 0 : index
    %c0_1 = arith.constant 0 : index
    %0 = vector.load %arg2[%c0, %c0_0, %c0_1] : memref<1x24x64xf32, #tpu.memory_space<vmem>>, vector<1x24x64xf32>
    %1 = vector.shape_cast %0 : vector<1x24x64xf32> to vector<24x64xf32>
    %c0_2 = arith.constant 0 : index
    %c0_3 = arith.constant 0 : index
    %c0_4 = arith.constant 0 : index
    %2 = vector.load %arg3[%c0_2, %c0_3, %c0_4] : memref<1x8x64xf32, #tpu.memory_space<vmem>>, vector<1x8x64xf32>
    %3 = vector.shape_cast %2 : vector<1x8x64xf32> to vector<8x64xf32>
    %4 = tpu.concatenate %1, %3 in 0 : vector<24x64xf32>, vector<8x64xf32> -> vector<32x64xf32>
    %5 = vector.extract_strided_slice %4 {offsets = [0, 0], sizes = [24, 64], strides = [1, 1]} : vector<32x64xf32> to vector<24x64xf32>
    %6 = vector.extract_strided_slice %4 {offsets = [1, 0], sizes = [24, 64], strides = [1, 1]} : vector<32x64xf32> to vector<24x64xf32>
    %7 = vector.extract_strided_slice %4 {offsets = [2, 0], sizes = [24, 64], strides = [1, 1]} : vector<32x64xf32> to vector<24x64xf32>
    %8 = vector.extract_strided_slice %4 {offsets = [3, 0], sizes = [24, 64], strides = [1, 1]} : vector<32x64xf32> to vector<24x64xf32>
    %9 = tpu.concatenate %5, %6, %7, %8 in 1 : vector<24x64xf32>, vector<24x64xf32>, vector<24x64xf32>, vector<24x64xf32> -> vector<24x256xf32>
    %10 = arith.truncf %9 : vector<24x256xf32> to vector<24x256xbf16>
    %c0_5 = arith.constant 0 : index
    %c0_6 = arith.constant 0 : index
    %11 = vector.load %arg4[%c0_5, %c0_6] : memref<256x256xbf16, #tpu.memory_space<vmem>>, vector<256x256xbf16>
    %cst = arith.constant dense<0.000000e+00> : vector<24x256xf32>
    %12 = tpu.matmul %10, %11, %cst {dimension_numbers = #tpu.dot_dimension_numbers<[1], [0], [0], [1], [0, 0, 1, 1], [], []>} : vector<24x256xbf16>, vector<256x256xbf16>, vector<24x256xf32> -> vector<24x256xf32>
    %13 = arith.mulf %12, %12 : vector<24x256xf32>
    %14 = vector.extract_strided_slice %13 {offsets = [0, 128], sizes = [24, 128], strides = [1, 1]} : vector<24x256xf32> to vector<24x128xf32>
    %15 = vector.extract_strided_slice %13 {offsets = [0, 0], sizes = [24, 128], strides = [1, 1]} : vector<24x256xf32> to vector<24x128xf32>
    %16 = tpu.concatenate %14, %15 in 1 : vector<24x128xf32>, vector<24x128xf32> -> vector<24x256xf32>
    %17 = arith.addf %13, %16 : vector<24x256xf32>
    %18 = tpu.iota {dimensions = array<i32: 1>} : vector<24x256xi32>
    %c0_i32 = arith.constant 0 : i32
    %19 = vector.broadcast %c0_i32 : i32 to vector<24x256xi32>
    %20 = arith.cmpi eq, %18, %19 : vector<24x256xi32>
    %c128_i32 = arith.constant 128 : i32
    %21 = vector.broadcast %c128_i32 : i32 to vector<24x256xi32>
    %22 = arith.cmpi eq, %18, %21 : vector<24x256xi32>
    %23 = arith.ori %20, %22 : vector<24x256xi1>
    %24 = arith.select %23, %13, %17 : vector<24x256xi1>, vector<24x256xf32>
    %25 = tpu.iota {dimensions = array<i32: 0>} : vector<24x256xi32>
    %c24_i32 = arith.constant 24 : i32
    %26 = arith.muli %arg1, %c24_i32 : i32
    %27 = vector.broadcast %26 : i32 to vector<24x256xi32>
    %28 = arith.addi %25, %27 : vector<24x256xi32>
    %c17_i32 = arith.constant 17 : i32
    %29 = vector.broadcast %c17_i32 : i32 to vector<24x256xi32>
    %30 = arith.cmpi slt, %28, %29 : vector<24x256xi32>
    %cst_7 = arith.constant 0.000000e+00 : f32
    %31 = vector.broadcast %cst_7 : f32 to vector<24x256xf32>
    %32 = arith.select %30, %24, %31 : vector<24x256xi1>, vector<24x256xf32>
    %33 = vector.shape_cast %32 : vector<24x256xf32> to vector<1x24x256xf32>
    %cst_8 = arith.constant dense<0xFF800000> : vector<1xf32>
    %34 = vector.multi_reduction <maximumf>, %33, %cst_8 [1, 2] : vector<1x24x256xf32> to vector<1xf32>
    %35 = vector.shape_cast %34 : vector<1xf32> to vector<1x1x1xf32>
    %36 = vector.extract %35[0, 0, 0] : f32 from vector<1x1x1xf32>
    %37 = vector.broadcast %36 : f32 to vector<8x128xf32>
    %c0_9 = arith.constant 0 : index
    %c0_10 = arith.constant 0 : index
    %c0_11 = arith.constant 0 : index
    %c0_12 = arith.constant 0 : index
    %38 = vector.load %arg5[%c0_9, %c0_10, %c0_11, %c0_12] : memref<1x1x8x128xf32, #tpu.memory_space<vmem>>, vector<1x1x8x128xf32>
    %39 = vector.shape_cast %38 : vector<1x1x8x128xf32> to vector<8x128xf32>
    %40 = vector.shape_cast %37 : vector<8x128xf32> to vector<1x1x8x128xf32>
    tpu.vector_store %arg5[%c0_9, %c0_10, %c0_11, %c0_12], %40 {strides = array<i32>} : memref<1x1x8x128xf32, #tpu.memory_space<vmem>>, vector<1x1x8x128xf32>,
    return
  }
  func.func @transform_0(%arg0: i32, %arg1: i32) -> (i32, i32, i32) {
    %c0_i32 = arith.constant 0 : i32
    %c0_i32_0 = arith.constant 0 : i32
    return %arg0, %arg1, %c0_i32 : i32, i32, i32
  }
  func.func @transform_1(%arg0: i32, %arg1: i32) -> (i32, i32, i32) {
    %c1_i32 = arith.constant 1 : i32
    %0 = arith.addi %arg1, %c1_i32 : i32
    %c3_i32 = arith.constant 3 : i32
    %1 = arith.muli %0, %c3_i32 : i32
    %c0_i32 = arith.constant 0 : i32
    %c0_i32_0 = arith.constant 0 : i32
    return %arg0, %1, %c0_i32 : i32, i32, i32
  }
  func.func @transform_2(%arg0: i32, %arg1: i32) -> (i32, i32) {
    %c0_i32 = arith.constant 0 : i32
    %c0_i32_0 = arith.constant 0 : i32
    %c0_i32_1 = arith.constant 0 : i32
    return %c0_i32, %c0_i32_0 : i32, i32
  }
  func.func @transform_3(%arg0: i32, %arg1: i32) -> (i32, i32, i32, i32) {
    %c0_i32 = arith.constant 0 : i32
    %c0_i32_0 = arith.constant 0 : i32
    %c0_i32_1 = arith.constant 0 : i32
    return %arg0, %arg1, %c0_i32, %c0_i32_0 : i32, i32, i32, i32
  }
}

module attributes {stable_mosaic.version = 11 : i64} {
  func.func @_loudness_kernel(%arg0: i32, %arg1: i32, %arg2: memref<1x24x64xf32, #tpu.memory_space<vmem>>, %arg3: memref<1x8x64xf32, #tpu.memory_space<vmem>>, %arg4: memref<256x256xbf16, #tpu.memory_space<vmem>>, %arg5: memref<1x256xf32, #tpu.memory_space<vmem>>, %arg6: memref<2xf32, #tpu.memory_space<smem>>, %arg7: memref<1x24x1xf32, #tpu.memory_space<vmem>>) attributes {dimension_semantics = [#tpu.dimension_semantics<parallel>, #tpu.dimension_semantics<parallel>], iteration_bounds = array<i64: 2, 1>, scalar_prefetch = 0 : i64, scratch_operands = 0 : i64, tpu.core_type = #tpu.core_type<tc>, window_params = [{transform_indices = @transform_0, window_bounds = array<i64: 1, 24, 64>}, {transform_indices = @transform_1, window_bounds = array<i64: 1, 8, 64>}, {pipeline_mode = #tpu.pipeline_mode<synchronous>, transform_indices = @transform_2, window_bounds = array<i64: 256, 256>}, {pipeline_mode = #tpu.pipeline_mode<synchronous>, transform_indices = @transform_3, window_bounds = array<i64: 1, 256>}, {transform_indices = @transform_4, window_bounds = array<i64: 2>}, {transform_indices = @transform_5, window_bounds = array<i64: 1, 24, 1>}]} {
    %c0 = arith.constant 0 : index
    %c0_0 = arith.constant 0 : index
    %c0_1 = arith.constant 0 : index
    %0 = vector.load %arg2[%c0, %c0_0, %c0_1] : memref<1x24x64xf32, #tpu.memory_space<vmem>>, vector<1x24x64xf32>
    %1 = vector.shape_cast %0 : vector<1x24x64xf32> to vector<24x64xf32>
    %c0_2 = arith.constant 0 : index
    %c0_3 = arith.constant 0 : index
    %c0_4 = arith.constant 0 : index
    %2 = vector.load %arg3[%c0_2, %c0_3, %c0_4] : memref<1x8x64xf32, #tpu.memory_space<vmem>>, vector<1x8x64xf32>
    %3 = vector.shape_cast %2 : vector<1x8x64xf32> to vector<8x64xf32>
    %4 = tpu.concatenate %1, %3 in 0 : vector<24x64xf32>, vector<8x64xf32> -> vector<32x64xf32>
    %5 = vector.extract_strided_slice %4 {offsets = [0, 0], sizes = [24, 64], strides = [1, 1]} : vector<32x64xf32> to vector<24x64xf32>
    %6 = vector.extract_strided_slice %4 {offsets = [1, 0], sizes = [24, 64], strides = [1, 1]} : vector<32x64xf32> to vector<24x64xf32>
    %7 = vector.extract_strided_slice %4 {offsets = [2, 0], sizes = [24, 64], strides = [1, 1]} : vector<32x64xf32> to vector<24x64xf32>
    %8 = vector.extract_strided_slice %4 {offsets = [3, 0], sizes = [24, 64], strides = [1, 1]} : vector<32x64xf32> to vector<24x64xf32>
    %9 = tpu.concatenate %5, %6, %7, %8 in 1 : vector<24x64xf32>, vector<24x64xf32>, vector<24x64xf32>, vector<24x64xf32> -> vector<24x256xf32>
    %10 = arith.truncf %9 : vector<24x256xf32> to vector<24x256xbf16>
    %c0_5 = arith.constant 0 : index
    %c0_6 = arith.constant 0 : index
    %11 = vector.load %arg4[%c0_5, %c0_6] : memref<256x256xbf16, #tpu.memory_space<vmem>>, vector<256x256xbf16>
    %cst = arith.constant dense<0.000000e+00> : vector<24x256xf32>
    %12 = tpu.matmul %10, %11, %cst {dimension_numbers = #tpu.dot_dimension_numbers<[1], [0], [0], [1], [0, 0, 1, 1], [], []>} : vector<24x256xbf16>, vector<256x256xbf16>, vector<24x256xf32> -> vector<24x256xf32>
    %13 = arith.mulf %12, %12 : vector<24x256xf32>
    %14 = vector.extract_strided_slice %13 {offsets = [0, 128], sizes = [24, 128], strides = [1, 1]} : vector<24x256xf32> to vector<24x128xf32>
    %15 = vector.extract_strided_slice %13 {offsets = [0, 0], sizes = [24, 128], strides = [1, 1]} : vector<24x256xf32> to vector<24x128xf32>
    %16 = tpu.concatenate %14, %15 in 1 : vector<24x128xf32>, vector<24x128xf32> -> vector<24x256xf32>
    %17 = arith.addf %13, %16 : vector<24x256xf32>
    %18 = tpu.iota {dimensions = array<i32: 1>} : vector<24x256xi32>
    %c0_i32 = arith.constant 0 : i32
    %19 = vector.broadcast %c0_i32 : i32 to vector<24x256xi32>
    %20 = arith.cmpi eq, %18, %19 : vector<24x256xi32>
    %c128_i32 = arith.constant 128 : i32
    %21 = vector.broadcast %c128_i32 : i32 to vector<24x256xi32>
    %22 = arith.cmpi eq, %18, %21 : vector<24x256xi32>
    %23 = arith.ori %20, %22 : vector<24x256xi1>
    %24 = arith.select %23, %13, %17 : vector<24x256xi1>, vector<24x256xf32>
    %25 = arith.index_cast %arg0 : i32 to index
    %26 = memref.load %arg6[%25] : memref<2xf32, #tpu.memory_space<smem>>
    %27 = vector.broadcast %26 : f32 to vector<24x256xf32>
    %28 = arith.maximumf %24, %27 : vector<24x256xf32>
    %c0_7 = arith.constant 0 : index
    %c0_8 = arith.constant 0 : index
    %29 = vector.load %arg5[%c0_7, %c0_8] : memref<1x256xf32, #tpu.memory_space<vmem>>, vector<1x256xf32>
    %30 = vector.broadcast %29 : vector<1x256xf32> to vector<24x256xf32>
    %31 = arith.mulf %28, %30 : vector<24x256xf32>
    %32 = math.sqrt %31 : vector<24x256xf32>
    %cst_9 = arith.constant dense<0.000000e+00> : vector<24xf32>
    %33 = vector.multi_reduction <add>, %32, %cst_9 [1] : vector<24x256xf32> to vector<24xf32>
    %34 = vector.shape_cast %33 : vector<24xf32> to vector<24x1xf32>
    %cst_10 = arith.constant 0.00775193795 : f32
    %35 = vector.broadcast %cst_10 : f32 to vector<24x1xf32>
    %36 = arith.mulf %34, %35 : vector<24x1xf32>
    %c0_11 = arith.constant 0 : index
    %c0_12 = arith.constant 0 : index
    %c0_13 = arith.constant 0 : index
    %37 = vector.load %arg7[%c0_11, %c0_12, %c0_13] : memref<1x24x1xf32, #tpu.memory_space<vmem>>, vector<1x24x1xf32>
    %38 = vector.shape_cast %37 : vector<1x24x1xf32> to vector<24x1xf32>
    %39 = vector.shape_cast %36 : vector<24x1xf32> to vector<1x24x1xf32>
    tpu.vector_store %arg7[%c0_11, %c0_12, %c0_13], %39 {strides = array<i32>} : memref<1x24x1xf32, #tpu.memory_space<vmem>>, vector<1x24x1xf32>,
    return
  }
  func.func @transform_0(%arg0: i32, %arg1: i32) -> (i32, i32, i32) {
    %c0_i32 = arith.constant 0 : i32
    %c0_i32_0 = arith.constant 0 : i32
    return %arg0, %arg1, %c0_i32 : i32, i32, i32
  }
  func.func @transform_1(%arg0: i32, %arg1: i32) -> (i32, i32, i32) {
    %c1_i32 = arith.constant 1 : i32
    %0 = arith.addi %arg1, %c1_i32 : i32
    %c3_i32 = arith.constant 3 : i32
    %1 = arith.muli %0, %c3_i32 : i32
    %c0_i32 = arith.constant 0 : i32
    %c0_i32_0 = arith.constant 0 : i32
    return %arg0, %1, %c0_i32 : i32, i32, i32
  }
  func.func @transform_2(%arg0: i32, %arg1: i32) -> (i32, i32) {
    %c0_i32 = arith.constant 0 : i32
    %c0_i32_0 = arith.constant 0 : i32
    %c0_i32_1 = arith.constant 0 : i32
    return %c0_i32, %c0_i32_0 : i32, i32
  }
  func.func @transform_3(%arg0: i32, %arg1: i32) -> (i32, i32) {
    %c0_i32 = arith.constant 0 : i32
    %c0_i32_0 = arith.constant 0 : i32
    %c0_i32_1 = arith.constant 0 : i32
    return %c0_i32, %c0_i32_0 : i32, i32
  }
  func.func @transform_4(%arg0: i32, %arg1: i32) -> i32 {
    %c0_i32 = arith.constant 0 : i32
    %c0_i32_0 = arith.constant 0 : i32
    return %c0_i32 : i32
  }
  func.func @transform_5(%arg0: i32, %arg1: i32) -> (i32, i32, i32) {
    %c0_i32 = arith.constant 0 : i32
    %c0_i32_0 = arith.constant 0 : i32
    return %arg0, %arg1, %c0_i32 : i32, i32, i32
  }
}

</mosaic_0001>

<llo_original>
// kernel: loudness_extractor.2
$region0: #{loudness_extractor.2}
  #allocation0 [shape = 'u32[]', space=smem, size = 0x4, offset = 0x4, fixed_abs, tag = 'smem constant byte address 0x4 - core index']
  #allocation1 [shape = 'u32[144,128]{1,0:T(1,128)}', space=vmem, size = 0x12000, scoped, tag = 'internal scratch']
  %s0 = inlined_call_operand.vmem [shape: f32[2,32,64], index: 0, kind: input, shape index: {}, may-alias: {0,1}]
  %s1 = inlined_call_operand.vmem [shape: f32[2,32,64], index: 1, kind: input, shape index: {}, may-alias: {0,1}]
  %s2 = inlined_call_operand.hbm [shape: bf16[256,256], index: 2, kind: input, shape index: {}]
  %s3 = inlined_call_operand.vmem [shape: f32[2,1,8,128], index: 3, kind: output, shape index: {}]
  %s4 = sld [smem:[#allocation0]]
  $region49: #{loudness_extractor.2} parent=0
    _
  %s6 = ssub.s32 1, %s4
  %s7 = scalar_select 0, %s6, %s4
  $region1: #{loudness_extractor.2} parent=0
    #allocation2 [shape = 'u8[131072]{0}', space=vmem, size = 0x20000, scoped, tag = 'input window, operand 2, single buffered']
    #allocation3 [shape = 's32[2]{0}', space=sflag, size = 0x8, scoped, tag = 'scoped memory for loudness_extractor.2']
    %8 = vsyncpa [#allocation3], 0
    loop: start=0, step=1, limit=4
    $region2: #{loudness_extractor.2} parent=1 // loop_pre_header
      _
    $region3: #{loudness_extractor.2} parent=1 // loop_header
      %s10 = sphi 0, %s14
      %p11 = scmp.ge.s32.totalorder %s10, 4
      %s17 = sphi 0, %s29
      %s18 = sphi 0, %s25
      %s19 = sphi 0, %s17
      %s20 = sphi 0, %s18
      %s21 = sphi 0, %s19
      %s22 = sphi 0, %s20
      %s34 = sphi 0, %s36
      %s37 = sphi 0, %s34
      %s38 = sphi 0, %s37
      %s54 = sphi 0, %s38
      %s66 = sphi 0, %s68
      %s69 = sphi 0, %s66
      %s70 = sphi 0, %s69
      %s86 = sphi 0, %s70
      %s90 = sphi 0, %s90
      %s92 = sphi 0, %s90
      %s93 = sphi 0, %s92
      %s107 = sphi 0, %s93
      %s115 = sphi 0, %s117
      %s118 = sphi 0, %s115
      %s119 = sphi 0, %s118
      %s135 = sphi 0, %s119
    $region4: #{loudness_extractor.2} parent=1 // loop_header_branch
      %13 = sbr.rel (%p11) target = $region8
    $region5: #{loudness_extractor.2} parent=1 // loop_body
      %s15 = ssub.s32 %s10, 1
      %s16 = ssub.s32 %s10, 2
      %s23 = sadd.s32 1, %s18
      %p24 = scmp.ge.s32.totalorder %s23, 1
      %s25 = scalar_select %p24, 0, %s23
      %s26 = sadd.s32 1, %s17
      %s27 = scalar_select %p24, %s26, %s17
      %p28 = scmp.ge.s32.totalorder %s27, 2
      %s29 = scalar_select %p28, 0, %s27
      %s30 = ssub.s32 %s17, %s29
      %s31 = ssub.s32 %s18, %s25
      %s32 = sor.u32 %s30, %s31
      %p33 = scmp.eq.s32.totalorder %s32, 0
      %s35 = sadd.s32 %s34, 1
      %s36 = scalar_select %p33, %s34, %s35
      %p39 = pneg %p33
      %p40 = scmp.eq.s32.totalorder %s10, 1
      %p41 = por %p39, %p40
      %p42 = scmp.ne.s32.totalorder %s34, %s37
      %p43 = scmp.eq.s32.totalorder %s10, 0
      %p44 = por %p42, %p43
      %p45 = scmp.ne.s32.totalorder %s34, %s37
      %p46 = scmp.eq.s32.totalorder %s15, 1
      %p47 = por %p45, %p46
      %p48 = scmp.ne.s32.totalorder %s37, %s38
      %p49 = scmp.eq.s32.totalorder %s15, 0
      %p50 = por %p48, %p49
      %p51 = scmp.ne.s32.totalorder %s37, %s38
      %p52 = scmp.eq.s32.totalorder %s16, 1
      %p53 = por %p51, %p52
      %p55 = scmp.ne.s32.totalorder %s38, %s54
      %p56 = scmp.eq.s32.totalorder %s16, 0
      %p57 = por %p55, %p56
      %s58 = sadd.s32 %s18, 1
      %s59 = smul.u32 %s58, 3
      %s60 = sadd.s32 %s25, 1
      %s61 = smul.u32 %s60, 3
      %s62 = ssub.s32 %s17, %s29
      %s63 = ssub.s32 %s59, %s61
      %s64 = sor.u32 %s62, %s63
      %p65 = scmp.eq.s32.totalorder %s64, 0
      %s67 = sadd.s32 %s66, 1
      %s68 = scalar_select %p65, %s66, %s67
      %p71 = pneg %p65
      %p72 = scmp.eq.s32.totalorder %s10, 1
      %p73 = por %p71, %p72
      %p74 = scmp.ne.s32.totalorder %s66, %s69
      %p75 = scmp.eq.s32.totalorder %s10, 0
      %p76 = por %p74, %p75
      %p77 = scmp.ne.s32.totalorder %s66, %s69
      %p78 = scmp.eq.s32.totalorder %s15, 1
      %p79 = por %p77, %p78
      %p80 = scmp.ne.s32.totalorder %s69, %s70
      %p81 = scmp.eq.s32.totalorder %s15, 0
      %p82 = por %p80, %p81
      %p83 = scmp.ne.s32.totalorder %s69, %s70
      %p84 = scmp.eq.s32.totalorder %s16, 1
      %p85 = por %p83, %p84
      %p87 = scmp.ne.s32.totalorder %s70, %s86
      %p88 = scmp.eq.s32.totalorder %s16, 0
      %p89 = por %p87, %p88
      %s91 = sadd.s32 %s90, 1
      %p94 = scmp.eq.s32.totalorder %s10, 1
      %p95 = scmp.ne.s32.totalorder %s90, %s92
      %p96 = scmp.eq.s32.totalorder %s10, 0
      %p97 = por %p95, %p96
      %p98 = scmp.ne.s32.totalorder %s90, %s92
      %p99 = scmp.eq.s32.totalorder %s15, 1
      %p100 = por %p98, %p99
      %p101 = scmp.ne.s32.totalorder %s92, %s93
      %p102 = scmp.eq.s32.totalorder %s15, 0
      %p103 = por %p101, %p102
      %p104 = scmp.ne.s32.totalorder %s92, %s93
      %p105 = scmp.eq.s32.totalorder %s16, 1
      %p106 = por %p104, %p105
      %p108 = scmp.ne.s32.totalorder %s93, %s107
      %p109 = scmp.eq.s32.totalorder %s16, 0
      %p110 = por %p108, %p109
      %s111 = ssub.s32 %s17, %s29
      %s112 = ssub.s32 %s18, %s25
      %s113 = sor.u32 %s111, %s112
      %p114 = scmp.eq.s32.totalorder %s113, 0
      %s116 = sadd.s32 %s115, 1
      %s117 = scalar_select %p114, %s115, %s116
      %p120 = pneg %p114
      %p121 = scmp.eq.s32.totalorder %s10, 1
      %p122 = por %p120, %p121
      %p123 = scmp.ne.s32.totalorder %s115, %s118
      %p124 = scmp.eq.s32.totalorder %s10, 0
      %p125 = por %p123, %p124
      %p126 = scmp.ne.s32.totalorder %s115, %s118
      %p127 = scmp.eq.s32.totalorder %s15, 1
      %p128 = por %p126, %p127
      %p129 = scmp.ne.s32.totalorder %s118, %s119
      %p130 = scmp.eq.s32.totalorder %s15, 0
      %p131 = por %p129, %p130
      %p132 = scmp.ne.s32.totalorder %s118, %s119
      %p133 = scmp.eq.s32.totalorder %s16, 1
      %p134 = por %p132, %p133
      %p136 = scmp.ne.s32.totalorder %s119, %s135
      %p137 = scmp.eq.s32.totalorder %s16, 0
      %p138 = por %p136, %p137
      %p139 = scmp.le.s32.totalorder 1, %s10
      %p140 = scmp.lt.s32.totalorder %s10, 3
      %p141 = pnand %p139, %p140
      %p142 = pneg %p141
      // Predicated region
      $region9: #{loudness_extractor.2} parent=5 // pred_check
        _
      $region10: #{loudness_extractor.2} parent=5 // pred_check_branch
        %144 = sbr.rel (%p141) target = $region12
      $region11: #{loudness_extractor.2} parent=5 // pred_region
        %s145 = ssub.s32 %s10, 1
        // Predicated region
        $region13: #{loudness_extractor.2} parent=11 // pred_check
          %p146 = pneg %p103
        $region14: #{loudness_extractor.2} parent=11 // pred_check_branch
          %148 = sbr.rel (%p146) target = $region16
        $region15: #{loudness_extractor.2} parent=11 // pred_region
          %s150 = ssub.s32 4096, 4096
          %151 = vsyncadd [#allocation3], %s150
          %s152 = sshll.u32 [#allocation2], 4
          %s153 = int_to_ptr.vmem [resolvable:$true] %s152
          %158 = dma.hbm_to_vmem [thread:$0]  %s2, 4096, %s153, [#allocation3], 128, 128, 8
        $region16: #{loudness_extractor.2} parent=11 // pred_fallthru
          _
      $region12: #{loudness_extractor.2} parent=5 // pred_fallthru
        _
      %p159 = scmp.lt.s32.totalorder %s10, 2
      // Predicated region
      $region17: #{loudness_extractor.2} parent=5 // pred_check
        %p160 = pneg %p159
      $region18: #{loudness_extractor.2} parent=5 // pred_check_branch
        %162 = sbr.rel (%p160) target = $region20
      $region19: #{loudness_extractor.2} parent=5 // pred_region
        // Predicated region
        $region21: #{loudness_extractor.2} parent=19 // pred_check
          %p163 = pneg %p44
        $region22: #{loudness_extractor.2} parent=19 // pred_check_branch
          %165 = sbr.rel (%p163) target = $region24
        $region23: #{loudness_extractor.2} parent=19 // pred_region
          %s166 = smul.u32 3, %s18
          %s167 = ssub.s32 4, %s166
          %p168 = scmp.lt.s32.totalorder %s167, 3
          %s169 = scalar_select %p168, %s167, 3
          %s170 = smul.u32 128, %s169
          %p171 = scmp.lt.s32.totalorder %s17, 1
          %s172 = scalar_select %p171, %s17, 1
          %p173 = scmp.lt.s32.totalorder %s166, 3
          %s174 = scalar_select %p173, %s166, 3
          %s175 = smul.addr %s172, 4
          %s176 = sadd.s32 %s174, %s175
          %s177 = smul.addr %s176, 8
          %s178 = scalar_lea.vmem %s0, %s177
          %s179 = smul.u32 3, %s18
          %s180 = ssub.s32 4, %s179
          %p181 = scmp.lt.s32.totalorder %s180, 3
          %s182 = scalar_select %p181, %s180, 3
          %s183 = smul.u32 128, %s182
        $region24: #{loudness_extractor.2} parent=19 // pred_fallthru
          _
        // Predicated region
        $region25: #{loudness_extractor.2} parent=19 // pred_check
          %p184 = pneg %p76
        $region26: #{loudness_extractor.2} parent=19 // pred_check_branch
          %186 = sbr.rel (%p184) target = $region28
        $region27: #{loudness_extractor.2} parent=19 // pred_region
          %s187 = sadd.s32 %s18, 1
          %s188 = smul.u32 %s187, 3
          %p189 = scmp.lt.s32.totalorder %s17, 1
          %s190 = scalar_select %p189, %s17, 1
          %p191 = scmp.lt.s32.totalorder %s188, 3
          %s192 = scalar_select %p191, %s188, 3
          %s193 = smul.addr %s190, 4
          %s194 = sadd.s32 %s192, %s193
          %s195 = smul.addr %s194, 8
          %s196 = scalar_lea.vmem %s1, %s195
          %s197 = sadd.s32 %s18, 1
          %s198 = smul.u32 %s197, 3
        $region28: #{loudness_extractor.2} parent=19 // pred_fallthru
          _
      $region20: #{loudness_extractor.2} parent=5 // pred_fallthru
        _
      %p199 = scmp.le.s32.totalorder 1, %s10
      %p200 = scmp.lt.s32.totalorder %s10, 3
      %p201 = pnand %p199, %p200
      %p202 = pneg %p201
      // Predicated region
      $region29: #{loudness_extractor.2} parent=5 // pred_check
        _
      $region30: #{loudness_extractor.2} parent=5 // pred_check_branch
        %204 = sbr.rel (%p201) target = $region32
      $region31: #{loudness_extractor.2} parent=5 // pred_region
        %s205 = ssub.s32 %s10, 1
        // Predicated region
        $region33: #{loudness_extractor.2} parent=31 // pred_check
          %p206 = pneg %p103
        $region34: #{loudness_extractor.2} parent=31 // pred_check_branch
          %208 = sbr.rel (%p206) target = $region36
        $region35: #{loudness_extractor.2} parent=31 // pred_region
          %209 = dma.done [#allocation3], 4096
        $region36: #{loudness_extractor.2} parent=31 // pred_fallthru
          _
        %s210 = smul.u32 3, %s20
        %s211 = ssub.s32 4, %s210
        %p212 = scmp.lt.s32.totalorder %s211, 3
        %s213 = scalar_select %p212, %s211, 3
        %s214 = smul.u32 128, %s213
        %p215 = scmp.lt.s32.totalorder %s19, 1
        %s216 = scalar_select %p215, %s19, 1
        %p217 = scmp.lt.s32.totalorder %s210, 3
        %s218 = scalar_select %p217, %s210, 3
        %s219 = smul.addr %s216, 4
        %s220 = sadd.s32 %s218, %s219
        %s221 = smul.addr %s220, 8
        %s222 = scalar_lea.vmem %s0, %s221
        %p223 = pneg %p50
        %p224 = pneg %p47
        %s225 = sadd.s32 %s20, 1
        %s226 = smul.u32 %s225, 3
        %p227 = scmp.lt.s32.totalorder %s19, 1
        %s228 = scalar_select %p227, %s19, 1
        %p229 = scmp.lt.s32.totalorder %s226, 3
        %s230 = scalar_select %p229, %s226, 3
        %s231 = smul.addr %s228, 4
        %s232 = sadd.s32 %s230, %s231
        %s233 = smul.addr %s232, 8
        %s234 = scalar_lea.vmem %s1, %s233
        %p235 = pneg %p82
        %p236 = pneg %p79
        %p237 = pneg %p103
        %p238 = pneg %p100
        %p239 = pneg %p131
        %p240 = pneg %p128
        %p241 = scmp.lt.s32.totalorder %s19, 1
        %s242 = scalar_select %p241, %s19, 1
        %p243 = scmp.lt.s32.totalorder %s20, 0
        %s244 = scalar_select %p243, %s20, 0
        %s245 = sadd.s32 %s244, %s242
        %s246 = smul.addr %s245, 8
        %s247 = scalar_lea.vmem %s3, %s246
        %s248 = smul.u32 3, %s20
        %s249 = ssub.s32 4, %s248
        %p250 = scmp.lt.s32.totalorder %s249, 3
        %s251 = scalar_select %p250, %s249, 3
        %s252 = smul.u32 128, %s251
        %p253 = scmp.lt.s32.totalorder %s19, 1
        %s254 = scalar_select %p253, %s19, 1
        %p255 = scmp.lt.s32.totalorder %s248, 3
        %s256 = scalar_select %p255, %s248, 3
        %s257 = smul.addr %s254, 4
        %s258 = sadd.s32 %s256, %s257
        %s259 = smul.addr %s258, 8
        %s260 = scalar_lea.vmem %s0, %s259
        %s261 = smul.u32 3, %s20
        %s262 = ssub.s32 4, %s261
        %p263 = scmp.lt.s32.totalorder %s262, 3
        %s264 = scalar_select %p263, %s262, 3
        %s265 = smul.u32 128, %s264
        %s266 = sadd.s32 %s20, 1
        %s267 = smul.u32 %s266, 3
        %p268 = scmp.lt.s32.totalorder %s19, 1
        %s269 = scalar_select %p268, %s19, 1
        %p270 = scmp.lt.s32.totalorder %s267, 3
        %s271 = scalar_select %p270, %s267, 3
        %s272 = smul.addr %s269, 4
        %s273 = sadd.s32 %s271, %s272
        %s274 = smul.addr %s273, 8
        %s275 = scalar_lea.vmem %s1, %s274
        %s276 = sadd.s32 %s20, 1
        %s277 = smul.u32 %s276, 3
        %p278 = scmp.lt.s32.totalorder %s19, 1
        %s279 = scalar_select %p278, %s19, 1
        %p280 = scmp.lt.s32.totalorder %s20, 0
        %s281 = scalar_select %p280, %s20, 0
        %s282 = sadd.s32 %s281, %s279
        %s283 = smul.addr %s282, 8
        %s284 = scalar_lea.vmem %s3, %s283
        %v285 = vld [vmem:[%s260] sm:$0xff]
        %v286 = vld [vmem:[%s260 + $0x8] sm:$0xff]
        %v287 = vld [vmem:[%s260 + $0x10] sm:$0xff]
        %v288 = vld [vmem:[%s275] sm:$0xff]
        %vm293 = vcmask 1046528
        %v294 = vrot.slane %v285, 1
        %v295 = vrot.slane %v286, 1
        %v296 = vsel %vm293, %v294, %v295
        %v297 = vrot.slane %v287, 1
        %v298 = vsel %vm293, %v295, %v297
        %v299 = vrot.slane %v288, 1
        %v300 = vsel %vm293, %v297, %v299
        %301 = vrot.lane.b32.xlu0 %v296, 64
        %v302 = vpop.permute.xlu0 %301
        %303 = vrot.lane.b32.xlu0 %v298, 64
        %v304 = vpop.permute.xlu0 %303
        %305 = vrot.lane.b32.xlu0 %v300, 64
        %v306 = vpop.permute.xlu0 %305
        %vm310 = vcmask 1045504
        %v311 = vrot.slane %v285, 2
        %v312 = vrot.slane %v286, 2
        %v313 = vsel %vm310, %v311, %v312
        %v314 = vrot.slane %v287, 2
        %v315 = vsel %vm310, %v312, %v314
        %v316 = vrot.slane %v288, 2
        %v317 = vsel %vm310, %v314, %v316
        %vm321 = vcmask 1044480
        %v322 = vrot.slane %v285, 3
        %v323 = vrot.slane %v286, 3
        %v324 = vsel %vm321, %v322, %v323
        %v325 = vrot.slane %v287, 3
        %v326 = vsel %vm321, %v323, %v325
        %v327 = vrot.slane %v288, 3
        %v328 = vsel %vm321, %v325, %v327
        %329 = vrot.lane.b32.xlu0 %v324, 64
        %v330 = vpop.permute.xlu0 %329
        %331 = vrot.lane.b32.xlu0 %v326, 64
        %v332 = vpop.permute.xlu0 %331
        %333 = vrot.lane.b32.xlu0 %v328, 64
        %v334 = vpop.permute.xlu0 %333
        %vm338 = vcmask 523264
        %v339 = vsel %vm338, %v285, %v302
        %v340 = vsel %vm338, %v286, %v304
        %v341 = vsel %vm338, %v287, %v306
        %v342 = vsel %vm338, %v313, %v330
        %v343 = vsel %vm338, %v315, %v332
        %v344 = vsel %vm338, %v317, %v334
        %v345 = vpack.c.bf16 %v340, %v339
        %v346 = vpack.c.bf16 %v343, %v342
        %v347 = vpack.c.bf16 %v341, %v341
        %v348 = vpack.c.bf16 %v344, %v344
        %v349 = vld [vmem:[#allocation2] sm:$0xff]
        %v350 = vld [vmem:[#allocation2 + $0x8] sm:$0xff]
        %v351 = vld [vmem:[#allocation2 + $0x10] sm:$0xff]
        %v352 = vld [vmem:[#allocation2 + $0x18] sm:$0xff]
        %v353 = vld [vmem:[#allocation2 + $0x20] sm:$0xff]
        %v354 = vld [vmem:[#allocation2 + $0x28] sm:$0xff]
        %v355 = vld [vmem:[#allocation2 + $0x30] sm:$0xff]
        %v356 = vld [vmem:[#allocation2 + $0x38] sm:$0xff]
        %v357 = vld [vmem:[#allocation2 + $0x40] sm:$0xff]
        %v358 = vld [vmem:[#allocation2 + $0x48] sm:$0xff]
        %v359 = vld [vmem:[#allocation2 + $0x50] sm:$0xff]
        %v360 = vld [vmem:[#allocation2 + $0x58] sm:$0xff]
        %v361 = vld [vmem:[#allocation2 + $0x60] sm:$0xff]
        %v362 = vld [vmem:[#allocation2 + $0x68] sm:$0xff]
        %v363 = vld [vmem:[#allocation2 + $0x70] sm:$0xff]
        %v364 = vld [vmem:[#allocation2 + $0x78] sm:$0xff]
        %v365 = vld [vmem:[#allocation2 + $0x80] sm:$0xff]
        %v366 = vld [vmem:[#allocation2 + $0x88] sm:$0xff]
        %v367 = vld [vmem:[#allocation2 + $0x90] sm:$0xff]
        %v368 = vld [vmem:[#allocation2 + $0x98] sm:$0xff]
        %v369 = vld [vmem:[#allocation2 + $0xa0] sm:$0xff]
        %v370 = vld [vmem:[#allocation2 + $0xa8] sm:$0xff]
        %v371 = vld [vmem:[#allocation2 + $0xb0] sm:$0xff]
        %v372 = vld [vmem:[#allocation2 + $0xb8] sm:$0xff]
        %v373 = vld [vmem:[#allocation2 + $0xc0] sm:$0xff]
        %v374 = vld [vmem:[#allocation2 + $0xc8] sm:$0xff]
        %v375 = vld [vmem:[#allocation2 + $0xd0] sm:$0xff]
        %v376 = vld [vmem:[#allocation2 + $0xd8] sm:$0xff]
        %v377 = vld [vmem:[#allocation2 + $0xe0] sm:$0xff]
        %v378 = vld [vmem:[#allocation2 + $0xe8] sm:$0xff]
        %v379 = vld [vmem:[#allocation2 + $0xf0] sm:$0xff]
        %v380 = vld [vmem:[#allocation2 + $0xf8] sm:$0xff]
        %v413 = vunpack.c.l.b16 %v349
        %v414 = vunpack.c.h.b16 %v349
        %v415 = vunpack.c.l.b16 %v350
        %v416 = vunpack.c.h.b16 %v350
        %v417 = vunpack.c.l.b16 %v351
        %v418 = vunpack.c.h.b16 %v351
        %v419 = vunpack.c.l.b16 %v352
        %v420 = vunpack.c.h.b16 %v352
        %v421 = vunpack.c.l.b16 %v353
        %v422 = vunpack.c.h.b16 %v353
        %v423 = vunpack.c.l.b16 %v354
        %v424 = vunpack.c.h.b16 %v354
        %v425 = vunpack.c.l.b16 %v355
        %v426 = vunpack.c.h.b16 %v355
        %v427 = vunpack.c.l.b16 %v356
        %v428 = vunpack.c.h.b16 %v356
        %v429 = vunpack.c.l.b16 %v357
        %v430 = vunpack.c.h.b16 %v357
        %v431 = vunpack.c.l.b16 %v358
        %v432 = vunpack.c.h.b16 %v358
        %v433 = vunpack.c.l.b16 %v359
        %v434 = vunpack.c.h.b16 %v359
        %v435 = vunpack.c.l.b16 %v360
        %v436 = vunpack.c.h.b16 %v360
        %v437 = vunpack.c.l.b16 %v361
        %v438 = vunpack.c.h.b16 %v361
        %v439 = vunpack.c.l.b16 %v362
        %v440 = vunpack.c.h.b16 %v362
        %v441 = vunpack.c.l.b16 %v363
        %v442 = vunpack.c.h.b16 %v363
        %v443 = vunpack.c.l.b16 %v364
        %v444 = vunpack.c.h.b16 %v364
        %v445 = vunpack.c.l.b16 %v365
        %v446 = vunpack.c.h.b16 %v365
        %v447 = vunpack.c.l.b16 %v366
        %v448 = vunpack.c.h.b16 %v366
        %v449 = vunpack.c.l.b16 %v367
        %v450 = vunpack.c.h.b16 %v367
        %v451 = vunpack.c.l.b16 %v368
        %v452 = vunpack.c.h.b16 %v368
        %v453 = vunpack.c.l.b16 %v369
        %v454 = vunpack.c.h.b16 %v369
        %v455 = vunpack.c.l.b16 %v370
        %v456 = vunpack.c.h.b16 %v370
        %v457 = vunpack.c.l.b16 %v371
        %v458 = vunpack.c.h.b16 %v371
        %v459 = vunpack.c.l.b16 %v372
        %v460 = vunpack.c.h.b16 %v372
        %v461 = vunpack.c.l.b16 %v373
        %v462 = vunpack.c.h.b16 %v373
        %v463 = vunpack.c.l.b16 %v374
        %v464 = vunpack.c.h.b16 %v374
        %v465 = vunpack.c.l.b16 %v375
        %v466 = vunpack.c.h.b16 %v375
        %v467 = vunpack.c.l.b16 %v376
        %v468 = vunpack.c.h.b16 %v376
        %v469 = vunpack.c.l.b16 %v377
        %v470 = vunpack.c.h.b16 %v377
        %v471 = vunpack.c.l.b16 %v378
        %v472 = vunpack.c.h.b16 %v378
        %v473 = vunpack.c.l.b16 %v379
        %v474 = vunpack.c.h.b16 %v379
        %v475 = vunpack.c.l.b16 %v380
        %v476 = vunpack.c.h.b16 %v380
        %v477 = vpack.c.b16 %v415, %v413
        %v478 = vpack.c.b16 %v416, %v414
        %v479 = vpack.c.b16 %v419, %v417
        %v480 = vpack.c.b16 %v420, %v418
        %v481 = vpack.c.b16 %v423, %v421
        %v482 = vpack.c.b16 %v424, %v422
        %v483 = vpack.c.b16 %v427, %v425
        %v484 = vpack.c.b16 %v428, %v426
        %v485 = vpack.c.b16 %v431, %v429
        %v486 = vpack.c.b16 %v432, %v430
        %v487 = vpack.c.b16 %v435, %v433
        %v488 = vpack.c.b16 %v436, %v434
        %v489 = vpack.c.b16 %v439, %v437
        %v490 = vpack.c.b16 %v440, %v438
        %v491 = vpack.c.b16 %v443, %v441
        %v492 = vpack.c.b16 %v444, %v442
        %v493 = vpack.c.b16 %v447, %v445
        %v494 = vpack.c.b16 %v448, %v446
        %v495 = vpack.c.b16 %v451, %v449
        %v496 = vpack.c.b16 %v452, %v450
        %v497 = vpack.c.b16 %v455, %v453
        %v498 = vpack.c.b16 %v456, %v454
        %v499 = vpack.c.b16 %v459, %v457
        %v500 = vpack.c.b16 %v460, %v458
        %v501 = vpack.c.b16 %v463, %v461
        %v502 = vpack.c.b16 %v464, %v462
        %v503 = vpack.c.b16 %v467, %v465
        %v504 = vpack.c.b16 %v468, %v466
        %v505 = vpack.c.b16 %v471, %v469
        %v506 = vpack.c.b16 %v472, %v470
        %v507 = vpack.c.b16 %v475, %v473
        %v508 = vpack.c.b16 %v476, %v474
        %541 = vmatprep.subr.bf16.mxu0 %v478
        %542 = vmatpush1.bf16.msra.mxu0 %v477
        %543 = vmatprep.subr.bf16.mxu0 %v480
        %544 = vmatpush1.bf16.msra.mxu0 %v479
        %545 = vmatprep.subr.bf16.mxu0 %v482
        %546 = vmatpush1.bf16.msra.mxu0 %v481
        %547 = vmatprep.subr.bf16.mxu0 %v484
        %548 = vmatpush1.bf16.msra.mxu0 %v483
        %549 = vmatprep.subr.bf16.mxu0 %v486
        %550 = vmatpush1.bf16.msra.mxu0 %v485
        %551 = vmatprep.subr.bf16.mxu0 %v488
        %552 = vmatpush1.bf16.msra.mxu0 %v487
        %553 = vmatprep.subr.bf16.mxu0 %v490
        %554 = vmatpush1.bf16.msra.mxu0 %v489
        %555 = vmatprep.subr.bf16.mxu0 %v492
        %556 = vmatpush1.bf16.msra.mxu0 %v491
        %557 = vmatprep.subr.bf16.mxu0 %v494
        %558 = vmatpush1.bf16.msra.mxu0 %v493
        %559 = vmatprep.subr.bf16.mxu0 %v496
        %560 = vmatpush1.bf16.msra.mxu0 %v495
        %561 = vmatprep.subr.bf16.mxu0 %v498
        %562 = vmatpush1.bf16.msra.mxu0 %v497
        %563 = vmatprep.subr.bf16.mxu0 %v500
        %564 = vmatpush1.bf16.msra.mxu0 %v499
        %565 = vmatprep.subr.bf16.mxu0 %v502
        %566 = vmatpush1.bf16.msra.mxu0 %v501
        %567 = vmatprep.subr.bf16.mxu0 %v504
        %568 = vmatpush1.bf16.msra.mxu0 %v503
        %569 = vmatprep.subr.bf16.mxu0 %v506
        %570 = vmatpush1.bf16.msra.mxu0 %v505
        %571 = vmatprep.subr.bf16.mxu0 %v508
        %572 = vmatpush1.bf16.msra.mxu0 %v507
        %573 = vmatprep.mubr.bf16.mxu0 %v346
        %574 = vmatmul.mubr.bf16.gmra.mrb[0].mxu0 %v345
        %v575 = vpop.f32.mrb[0].mxu0
        %v576 = vadd.f32 0.0, %v575
        %v577 = vpop.f32.mrb[0].mxu0
        %v578 = vadd.f32 0.0, %v577
        %v579 = vpop.f32.mrb[0].mxu0
        %v580 = vadd.f32 0.0, %v579
        %v581 = vpop.f32.mrb[0].mxu0
        %v582 = vadd.f32 0.0, %v581
        %583 = vmatprep.mubr.bf16.mxu0 %v348
        %584 = vmatmul.mubr.bf16.gmra.mrb[0].mxu0 %v347
        %v585 = vpop.f32.mrb[0].mxu0
        %v586 = vadd.f32 0.0, %v585
        %v587 = vpop.f32.mrb[0].mxu0
        %v588 = vadd.f32 0.0, %v587
        %v589 = vpop.f32.mrb[0].mxu0
        %v590 = vpop.f32.mrb[0].mxu0
        %591 = vdwg.mxu0
        %v592 = vmul.f32 %v576, %v576
        %v593 = vmul.f32 %v578, %v578
        %v594 = vmul.f32 %v580, %v580
        %v595 = vmul.f32 %v582, %v582
        %v596 = vmul.f32 %v586, %v586
        %v597 = vmul.f32 %v588, %v588
        %v598 = vadd.f32 %v592, %v593
        %v599 = vadd.f32 %v594, %v595
        %v600 = vadd.f32 %v596, %v597
        %v601 = vlaneseq
        %v602 = vand.u32 %v601, 127
        %v603 = vadd.s32 %v602, 128
        %vm604 = vcmp.eq.s32.totalorder %v602, 0
        %vm605 = vcmp.eq.s32.totalorder %v603, 0
        %vm606 = vcmp.eq.s32.totalorder %v602, 128
        %vm607 = vcmp.eq.s32.totalorder %v603, 128
        %vm608 = vmor %vm604, %vm606
        %vm609 = vmor %vm605, %vm607
        %v610 = vsel %vm608, %v592, %v598
        %v611 = vsel %vm609, %v593, %v598
        %v612 = vsel %vm608, %v594, %v599
        %v613 = vsel %vm609, %v595, %v599
        %v614 = vsel %vm608, %v596, %v600
        %v615 = vsel %vm609, %v597, %v600
        %v616 = vlaneseq
        %v617 = vshrl.u32 %v616, 7
        %v618 = vadd.s32 %v617, 8
        %v619 = vadd.s32 %v617, 16
        %s620 = smul.u32 %s20, 24
        %v621 = vstv %s620
        %v622 = vadd.s32 %v617, %v621
        %v623 = vadd.s32 %v618, %v621
        %v624 = vadd.s32 %v619, %v621
        %vm625 = vcmp.lt.s32.totalorder %v622, 17
        %vm626 = vcmp.lt.s32.totalorder %v623, 17
        %vm627 = vcmp.lt.s32.totalorder %v624, 17
        %v628 = vsel %vm625, %v610, 0.0
        %v629 = vsel %vm625, %v611, 0.0
        %v630 = vsel %vm626, %v612, 0.0
        %v631 = vsel %vm626, %v613, 0.0
        %v632 = vsel %vm627, %v614, 0.0
        %v633 = vsel %vm627, %v615, 0.0
        %v634 = vmax.f32 %v628, %v632
        %v635 = vmax.f32 %v629, %v633
        %v636 = vmax.f32 %v634, %v635
        %v637 = vmax.f32 %v630, %v631
        %v638 = vmax.f32 %v636, %v637
        %639 = vmax.xlane.f32.xlu0 %v638
        %v640 = vpop.xlane.xlu0 %639
        %v641 = vrot.slane %v640, 4
        %v642 = vmax.f32 %v640, %v641
        %v643 = vrot.slane %v642, 2
        %v644 = vmax.f32 %v642, %v643
        %v645 = vrot.slane %v644, 1
        %v646 = vmax.f32 %v644, %v645
        %s647 = vtos %v646
        %v648 = vstv %s647
        %649 = vst [vmem:[%s284] sm:$0xff] %v648
        %p650 = scmp.lt.s32.totalorder %s19, 1
        %s651 = scalar_select %p650, %s19, 1
        %p652 = scmp.lt.s32.totalorder %s20, 0
        %s653 = scalar_select %p652, %s20, 0
        %s654 = sadd.s32 %s653, %s651
        %s655 = smul.addr %s654, 8
        %s656 = scalar_lea.vmem %s3, %s655
        // Predicated region
        $region37: #{loudness_extractor.2} parent=31 // pred_check
          %p657 = pneg %p128
        $region38: #{loudness_extractor.2} parent=31 // pred_check_branch
          %659 = sbr.rel (%p657) target = $region40
        $region39: #{loudness_extractor.2} parent=31 // pred_region
          _
        $region40: #{loudness_extractor.2} parent=31 // pred_fallthru
          _
      $region32: #{loudness_extractor.2} parent=5 // pred_fallthru
        _
      %p660 = scmp.le.s32.totalorder 2, %s10
      // Predicated region
      $region41: #{loudness_extractor.2} parent=5 // pred_check
        %p661 = pneg %p660
      $region42: #{loudness_extractor.2} parent=5 // pred_check_branch
        %663 = sbr.rel (%p661) target = $region44
      $region43: #{loudness_extractor.2} parent=5 // pred_region
        %s664 = ssub.s32 %s10, 2
        // Predicated region
        $region45: #{loudness_extractor.2} parent=43 // pred_check
          %p665 = pneg %p134
        $region46: #{loudness_extractor.2} parent=43 // pred_check_branch
          %667 = sbr.rel (%p665) target = $region48
        $region47: #{loudness_extractor.2} parent=43 // pred_region
          %p668 = scmp.lt.s32.totalorder %s21, 1
          %s669 = scalar_select %p668, %s21, 1
          %p670 = scmp.lt.s32.totalorder %s22, 0
          %s671 = scalar_select %p670, %s22, 0
          %s672 = sadd.s32 %s671, %s669
          %s673 = smul.addr %s672, 8
          %s674 = scalar_lea.vmem %s3, %s673
        $region48: #{loudness_extractor.2} parent=43 // pred_fallthru
          _
      $region44: #{loudness_extractor.2} parent=5 // pred_fallthru
        _
    $region6: #{loudness_extractor.2} parent=1 // loop_footer
      %s14 = sadd.s32 1, %s10
    $region7: #{loudness_extractor.2} parent=1 // loop_footer_branch
      %9 = sbr.rel target = $region3
    $region8: #{loudness_extractor.2} parent=1 // loop_exit
      _
    %675 = vsyncpa [#allocation3], 1
    %s676 = scalar_lea.sflag [#allocation3], 1
    %677 = vsyncpa %s676, 1

// kernel: loudness_extractor.3
$region0: #{loudness_extractor.3}
  #allocation0 [shape = 'u32[]', space=smem, size = 0x4, offset = 0x4, fixed_abs, tag = 'smem constant byte address 0x4 - core index']
  #allocation1 [shape = 'u32[144,128]{1,0:T(1,128)}', space=vmem, size = 0x12000, scoped, tag = 'internal scratch']
  %s0 = inlined_call_operand.vmem [shape: f32[2,32,64], index: 0, kind: input, shape index: {}, may-alias: {0,1}]
  %s1 = inlined_call_operand.vmem [shape: f32[2,32,64], index: 1, kind: input, shape index: {}, may-alias: {0,1}]
  %s2 = inlined_call_operand.vmem [shape: bf16[256,256], index: 2, kind: input, shape index: {}]
  %s3 = inlined_call_operand.vmem [shape: f32[1,256], index: 3, kind: input, shape index: {}]
  %s4 = inlined_call_operand.vmem [shape: f32[2], index: 4, kind: input, shape index: {}]
  %s5 = inlined_call_operand.vmem [shape: f32[2,24,1], index: 5, kind: output, shape index: {}]
  %s6 = sld [smem:[#allocation0]]
  $region57: #{loudness_extractor.3} parent=0
    _
  %s8 = ssub.s32 1, %s6
  %s9 = scalar_select 0, %s8, %s6
  $region1: #{loudness_extractor.3} parent=0
    #allocation2 [shape = 'u8[512]{0}', space=smem, size = 0x200, scoped, tag = 'input window, operand 4, single buffered']
    #allocation3 [shape = 's32[2]{0}', space=sflag, size = 0x8, scoped, tag = 'scoped memory for loudness_extractor.3']
    %10 = vsyncpa [#allocation3], 0
    loop: start=0, step=1, limit=4
    $region2: #{loudness_extractor.3} parent=1 // loop_pre_header
      _
    $region3: #{loudness_extractor.3} parent=1 // loop_header
      %s12 = sphi 0, %s16
      %p13 = scmp.ge.s32.totalorder %s12, 4
      %s19 = sphi 0, %s31
      %s20 = sphi 0, %s27
      %s21 = sphi 0, %s19
      %s22 = sphi 0, %s20
      %s23 = sphi 0, %s21
      %s24 = sphi 0, %s22
      %s36 = sphi 0, %s38
      %s39 = sphi 0, %s36
      %s40 = sphi 0, %s39
      %s56 = sphi 0, %s40
      %s68 = sphi 0, %s70
      %s71 = sphi 0, %s68
      %s72 = sphi 0, %s71
      %s88 = sphi 0, %s72
      %s92 = sphi 0, %s92
      %s94 = sphi 0, %s92
      %s95 = sphi 0, %s94
      %s109 = sphi 0, %s95
      %s113 = sphi 0, %s113
      %s115 = sphi 0, %s113
      %s116 = sphi 0, %s115
      %s130 = sphi 0, %s116
      %s134 = sphi 0, %s134
      %s136 = sphi 0, %s134
      %s137 = sphi 0, %s136
      %s151 = sphi 0, %s137
      %s159 = sphi 0, %s161
      %s162 = sphi 0, %s159
      %s163 = sphi 0, %s162
      %s179 = sphi 0, %s163
    $region4: #{loudness_extractor.3} parent=1 // loop_header_branch
      %15 = sbr.rel (%p13) target = $region8
    $region5: #{loudness_extractor.3} parent=1 // loop_body
      %s17 = ssub.s32 %s12, 1
      %s18 = ssub.s32 %s12, 2
      %s25 = sadd.s32 1, %s20
      %p26 = scmp.ge.s32.totalorder %s25, 1
      %s27 = scalar_select %p26, 0, %s25
      %s28 = sadd.s32 1, %s19
      %s29 = scalar_select %p26, %s28, %s19
      %p30 = scmp.ge.s32.totalorder %s29, 2
      %s31 = scalar_select %p30, 0, %s29
      %s32 = ssub.s32 %s19, %s31
      %s33 = ssub.s32 %s20, %s27
      %s34 = sor.u32 %s32, %s33
      %p35 = scmp.eq.s32.totalorder %s34, 0
      %s37 = sadd.s32 %s36, 1
      %s38 = scalar_select %p35, %s36, %s37
      %p41 = pneg %p35
      %p42 = scmp.eq.s32.totalorder %s12, 1
      %p43 = por %p41, %p42
      %p44 = scmp.ne.s32.totalorder %s36, %s39
      %p45 = scmp.eq.s32.totalorder %s12, 0
      %p46 = por %p44, %p45
      %p47 = scmp.ne.s32.totalorder %s36, %s39
      %p48 = scmp.eq.s32.totalorder %s17, 1
      %p49 = por %p47, %p48
      %p50 = scmp.ne.s32.totalorder %s39, %s40
      %p51 = scmp.eq.s32.totalorder %s17, 0
      %p52 = por %p50, %p51
      %p53 = scmp.ne.s32.totalorder %s39, %s40
      %p54 = scmp.eq.s32.totalorder %s18, 1
      %p55 = por %p53, %p54
      %p57 = scmp.ne.s32.totalorder %s40, %s56
      %p58 = scmp.eq.s32.totalorder %s18, 0
      %p59 = por %p57, %p58
      %s60 = sadd.s32 %s20, 1
      %s61 = smul.u32 %s60, 3
      %s62 = sadd.s32 %s27, 1
      %s63 = smul.u32 %s62, 3
      %s64 = ssub.s32 %s19, %s31
      %s65 = ssub.s32 %s61, %s63
      %s66 = sor.u32 %s64, %s65
      %p67 = scmp.eq.s32.totalorder %s66, 0
      %s69 = sadd.s32 %s68, 1
      %s70 = scalar_select %p67, %s68, %s69
      %p73 = pneg %p67
      %p74 = scmp.eq.s32.totalorder %s12, 1
      %p75 = por %p73, %p74
      %p76 = scmp.ne.s32.totalorder %s68, %s71
      %p77 = scmp.eq.s32.totalorder %s12, 0
      %p78 = por %p76, %p77
      %p79 = scmp.ne.s32.totalorder %s68, %s71
      %p80 = scmp.eq.s32.totalorder %s17, 1
      %p81 = por %p79, %p80
      %p82 = scmp.ne.s32.totalorder %s71, %s72
      %p83 = scmp.eq.s32.totalorder %s17, 0
      %p84 = por %p82, %p83
      %p85 = scmp.ne.s32.totalorder %s71, %s72
      %p86 = scmp.eq.s32.totalorder %s18, 1
      %p87 = por %p85, %p86
      %p89 = scmp.ne.s32.totalorder %s72, %s88
      %p90 = scmp.eq.s32.totalorder %s18, 0
      %p91 = por %p89, %p90
      %s93 = sadd.s32 %s92, 1
      %p96 = scmp.eq.s32.totalorder %s12, 1
      %p97 = scmp.ne.s32.totalorder %s92, %s94
      %p98 = scmp.eq.s32.totalorder %s12, 0
      %p99 = por %p97, %p98
      %p100 = scmp.ne.s32.totalorder %s92, %s94
      %p101 = scmp.eq.s32.totalorder %s17, 1
      %p102 = por %p100, %p101
      %p103 = scmp.ne.s32.totalorder %s94, %s95
      %p104 = scmp.eq.s32.totalorder %s17, 0
      %p105 = por %p103, %p104
      %p106 = scmp.ne.s32.totalorder %s94, %s95
      %p107 = scmp.eq.s32.totalorder %s18, 1
      %p108 = por %p106, %p107
      %p110 = scmp.ne.s32.totalorder %s95, %s109
      %p111 = scmp.eq.s32.totalorder %s18, 0
      %p112 = por %p110, %p111
      %s114 = sadd.s32 %s113, 1
      %p117 = scmp.eq.s32.totalorder %s12, 1
      %p118 = scmp.ne.s32.totalorder %s113, %s115
      %p119 = scmp.eq.s32.totalorder %s12, 0
      %p120 = por %p118, %p119
      %p121 = scmp.ne.s32.totalorder %s113, %s115
      %p122 = scmp.eq.s32.totalorder %s17, 1
      %p123 = por %p121, %p122
      %p124 = scmp.ne.s32.totalorder %s115, %s116
      %p125 = scmp.eq.s32.totalorder %s17, 0
      %p126 = por %p124, %p125
      %p127 = scmp.ne.s32.totalorder %s115, %s116
      %p128 = scmp.eq.s32.totalorder %s18, 1
      %p129 = por %p127, %p128
      %p131 = scmp.ne.s32.totalorder %s116, %s130
      %p132 = scmp.eq.s32.totalorder %s18, 0
      %p133 = por %p131, %p132
      %s135 = sadd.s32 %s134, 1
      %p138 = scmp.eq.s32.totalorder %s12, 1
      %p139 = scmp.ne.s32.totalorder %s134, %s136
      %p140 = scmp.eq.s32.totalorder %s12, 0
      %p141 = por %p139, %p140
      %p142 = scmp.ne.s32.totalorder %s134, %s136
      %p143 = scmp.eq.s32.totalorder %s17, 1
      %p144 = por %p142, %p143
      %p145 = scmp.ne.s32.totalorder %s136, %s137
      %p146 = scmp.eq.s32.totalorder %s17, 0
      %p147 = por %p145, %p146
      %p148 = scmp.ne.s32.totalorder %s136, %s137
      %p149 = scmp.eq.s32.totalorder %s18, 1
      %p150 = por %p148, %p149
      %p152 = scmp.ne.s32.totalorder %s137, %s151
      %p153 = scmp.eq.s32.totalorder %s18, 0
      %p154 = por %p152, %p153
      %s155 = ssub.s32 %s19, %s31
      %s156 = ssub.s32 %s20, %s27
      %s157 = sor.u32 %s155, %s156
      %p158 = scmp.eq.s32.totalorder %s157, 0
      %s160 = sadd.s32 %s159, 1
      %s161 = scalar_select %p158, %s159, %s160
      %p164 = pneg %p158
      %p165 = scmp.eq.s32.totalorder %s12, 1
      %p166 = por %p164, %p165
      %p167 = scmp.ne.s32.totalorder %s159, %s162
      %p168 = scmp.eq.s32.totalorder %s12, 0
      %p169 = por %p167, %p168
      %p170 = scmp.ne.s32.totalorder %s159, %s162
      %p171 = scmp.eq.s32.totalorder %s17, 1
      %p172 = por %p170, %p171
      %p173 = scmp.ne.s32.totalorder %s162, %s163
      %p174 = scmp.eq.s32.totalorder %s17, 0
      %p175 = por %p173, %p174
      %p176 = scmp.ne.s32.totalorder %s162, %s163
      %p177 = scmp.eq.s32.totalorder %s18, 1
      %p178 = por %p176, %p177
      %p180 = scmp.ne.s32.totalorder %s163, %s179
      %p181 = scmp.eq.s32.totalorder %s18, 0
      %p182 = por %p180, %p181
      %p183 = scmp.le.s32.totalorder 1, %s12
      %p184 = scmp.lt.s32.totalorder %s12, 3
      %p185 = pnand %p183, %p184
      %p186 = pneg %p185
      // Predicated region
      $region9: #{loudness_extractor.3} parent=5 // pred_check
        _
      $region10: #{loudness_extractor.3} parent=5 // pred_check_branch
        %188 = sbr.rel (%p185) target = $region12
      $region11: #{loudness_extractor.3} parent=5 // pred_region
        %s189 = ssub.s32 %s12, 1
        // Predicated region
        $region13: #{loudness_extractor.3} parent=11 // pred_check
          %p190 = pneg %p105
        $region14: #{loudness_extractor.3} parent=11 // pred_check_branch
          %192 = sbr.rel (%p190) target = $region16
        $region15: #{loudness_extractor.3} parent=11 // pred_region
          _
        $region16: #{loudness_extractor.3} parent=11 // pred_fallthru
          _
        // Predicated region
        $region17: #{loudness_extractor.3} parent=11 // pred_check
          %p193 = pneg %p126
        $region18: #{loudness_extractor.3} parent=11 // pred_check_branch
          %195 = sbr.rel (%p193) target = $region20
        $region19: #{loudness_extractor.3} parent=11 // pred_region
          _
        $region20: #{loudness_extractor.3} parent=11 // pred_fallthru
          _
        // Predicated region
        $region21: #{loudness_extractor.3} parent=11 // pred_check
          %p196 = pneg %p147
        $region22: #{loudness_extractor.3} parent=11 // pred_check_branch
          %198 = sbr.rel (%p196) target = $region24
        $region23: #{loudness_extractor.3} parent=11 // pred_region
          %s200 = ssub.s32 16, 16
          %201 = vsyncadd [#allocation3], %s200
          %s203 = sshll.u32 %s4, 4
          %s204 = int_to_ptr.vmem [resolvable:$true] %s203
          %206 = dma.vmem_to_smem %s204, 16, [#allocation2], [#allocation3]
        $region24: #{loudness_extractor.3} parent=11 // pred_fallthru
          _
      $region12: #{loudness_extractor.3} parent=5 // pred_fallthru
        _
      %p207 = scmp.lt.s32.totalorder %s12, 2
      // Predicated region
      $region25: #{loudness_extractor.3} parent=5 // pred_check
        %p208 = pneg %p207
      $region26: #{loudness_extractor.3} parent=5 // pred_check_branch
        %210 = sbr.rel (%p208) target = $region28
      $region27: #{loudness_extractor.3} parent=5 // pred_region
        // Predicated region
        $region29: #{loudness_extractor.3} parent=27 // pred_check
          %p211 = pneg %p46
        $region30: #{loudness_extractor.3} parent=27 // pred_check_branch
          %213 = sbr.rel (%p211) target = $region32
        $region31: #{loudness_extractor.3} parent=27 // pred_region
          %s214 = smul.u32 3, %s20
          %s215 = ssub.s32 4, %s214
          %p216 = scmp.lt.s32.totalorder %s215, 3
          %s217 = scalar_select %p216, %s215, 3
          %s218 = smul.u32 128, %s217
          %p219 = scmp.lt.s32.totalorder %s19, 1
          %s220 = scalar_select %p219, %s19, 1
          %p221 = scmp.lt.s32.totalorder %s214, 3
          %s222 = scalar_select %p221, %s214, 3
          %s223 = smul.addr %s220, 4
          %s224 = sadd.s32 %s222, %s223
          %s225 = smul.addr %s224, 8
          %s226 = scalar_lea.vmem %s0, %s225
          %s227 = smul.u32 3, %s20
          %s228 = ssub.s32 4, %s227
          %p229 = scmp.lt.s32.totalorder %s228, 3
          %s230 = scalar_select %p229, %s228, 3
          %s231 = smul.u32 128, %s230
        $region32: #{loudness_extractor.3} parent=27 // pred_fallthru
          _
        // Predicated region
        $region33: #{loudness_extractor.3} parent=27 // pred_check
          %p232 = pneg %p78
        $region34: #{loudness_extractor.3} parent=27 // pred_check_branch
          %234 = sbr.rel (%p232) target = $region36
        $region35: #{loudness_extractor.3} parent=27 // pred_region
          %s235 = sadd.s32 %s20, 1
          %s236 = smul.u32 %s235, 3
          %p237 = scmp.lt.s32.totalorder %s19, 1
          %s238 = scalar_select %p237, %s19, 1
          %p239 = scmp.lt.s32.totalorder %s236, 3
          %s240 = scalar_select %p239, %s236, 3
          %s241 = smul.addr %s238, 4
          %s242 = sadd.s32 %s240, %s241
          %s243 = smul.addr %s242, 8
          %s244 = scalar_lea.vmem %s1, %s243
          %s245 = sadd.s32 %s20, 1
          %s246 = smul.u32 %s245, 3
        $region36: #{loudness_extractor.3} parent=27 // pred_fallthru
          _
      $region28: #{loudness_extractor.3} parent=5 // pred_fallthru
        _
      %p247 = scmp.le.s32.totalorder 1, %s12
      %p248 = scmp.lt.s32.totalorder %s12, 3
      %p249 = pnand %p247, %p248
      %p250 = pneg %p249
      // Predicated region
      $region37: #{loudness_extractor.3} parent=5 // pred_check
        _
      $region38: #{loudness_extractor.3} parent=5 // pred_check_branch
        %252 = sbr.rel (%p249) target = $region40
      $region39: #{loudness_extractor.3} parent=5 // pred_region
        %s253 = ssub.s32 %s12, 1
        // Predicated region
        $region41: #{loudness_extractor.3} parent=39 // pred_check
          %p254 = pneg %p147
        $region42: #{loudness_extractor.3} parent=39 // pred_check_branch
          %256 = sbr.rel (%p254) target = $region44
        $region43: #{loudness_extractor.3} parent=39 // pred_region
          %257 = dma.done [#allocation3], 16
        $region44: #{loudness_extractor.3} parent=39 // pred_fallthru
          _
        %258 = sfence
        %s259 = smul.u32 3, %s22
        %s260 = ssub.s32 4, %s259
        %p261 = scmp.lt.s32.totalorder %s260, 3
        %s262 = scalar_select %p261, %s260, 3
        %s263 = smul.u32 128, %s262
        %p264 = scmp.lt.s32.totalorder %s21, 1
        %s265 = scalar_select %p264, %s21, 1
        %p266 = scmp.lt.s32.totalorder %s259, 3
        %s267 = scalar_select %p266, %s259, 3
        %s268 = smul.addr %s265, 4
        %s269 = sadd.s32 %s267, %s268
        %s270 = smul.addr %s269, 8
        %s271 = scalar_lea.vmem %s0, %s270
        %p272 = pneg %p52
        %p273 = pneg %p49
        %s274 = sadd.s32 %s22, 1
        %s275 = smul.u32 %s274, 3
        %p276 = scmp.lt.s32.totalorder %s21, 1
        %s277 = scalar_select %p276, %s21, 1
        %p278 = scmp.lt.s32.totalorder %s275, 3
        %s279 = scalar_select %p278, %s275, 3
        %s280 = smul.addr %s277, 4
        %s281 = sadd.s32 %s279, %s280
        %s282 = smul.addr %s281, 8
        %s283 = scalar_lea.vmem %s1, %s282
        %p284 = pneg %p84
        %p285 = pneg %p81
        %p286 = pneg %p105
        %p287 = pneg %p102
        %p288 = pneg %p126
        %p289 = pneg %p123
        %p290 = pneg %p147
        %p291 = pneg %p144
        %p292 = pneg %p175
        %p293 = pneg %p172
        %s294 = smul.u32 3, %s22
        %p295 = scmp.lt.s32.totalorder %s21, 1
        %s296 = scalar_select %p295, %s21, 1
        %p297 = scmp.lt.s32.totalorder %s294, 2
        %s298 = scalar_select %p297, %s294, 2
        %s299 = smul.addr %s296, 3
        %s300 = sadd.s32 %s298, %s299
        %s301 = smul.addr %s300, 8
        %s302 = scalar_lea.vmem %s5, %s301
        %s303 = smul.u32 3, %s22
        %s304 = ssub.s32 4, %s303
        %p305 = scmp.lt.s32.totalorder %s304, 3
        %s306 = scalar_select %p305, %s304, 3
        %s307 = smul.u32 128, %s306
        %p308 = scmp.lt.s32.totalorder %s21, 1
        %s309 = scalar_select %p308, %s21, 1
        %p310 = scmp.lt.s32.totalorder %s303, 3
        %s311 = scalar_select %p310, %s303, 3
        %s312 = smul.addr %s309, 4
        %s313 = sadd.s32 %s311, %s312
        %s314 = smul.addr %s313, 8
        %s315 = scalar_lea.vmem %s0, %s314
        %s316 = smul.u32 3, %s22
        %s317 = ssub.s32 4, %s316
        %p318 = scmp.lt.s32.totalorder %s317, 3
        %s319 = scalar_select %p318, %s317, 3
        %s320 = smul.u32 128, %s319
        %s321 = sadd.s32 %s22, 1
        %s322 = smul.u32 %s321, 3
        %p323 = scmp.lt.s32.totalorder %s21, 1
        %s324 = scalar_select %p323, %s21, 1
        %p325 = scmp.lt.s32.totalorder %s322, 3
        %s326 = scalar_select %p325, %s322, 3
        %s327 = smul.addr %s324, 4
        %s328 = sadd.s32 %s326, %s327
        %s329 = smul.addr %s328, 8
        %s330 = scalar_lea.vmem %s1, %s329
        %s331 = sadd.s32 %s22, 1
        %s332 = smul.u32 %s331, 3
        %s333 = smul.u32 3, %s22
        %p334 = scmp.lt.s32.totalorder %s21, 1
        %s335 = scalar_select %p334, %s21, 1
        %p336 = scmp.lt.s32.totalorder %s333, 2
        %s337 = scalar_select %p336, %s333, 2
        %s338 = smul.addr %s335, 3
        %s339 = sadd.s32 %s337, %s338
        %s340 = smul.addr %s339, 8
        %s341 = scalar_lea.vmem %s5, %s340
        %s342 = smul.u32 3, %s22
        %v343 = vld [vmem:[%s315] sm:$0xff]
        %v344 = vld [vmem:[%s315 + $0x8] sm:$0xff]
        %v345 = vld [vmem:[%s315 + $0x10] sm:$0xff]
        %v346 = vld [vmem:[%s330] sm:$0xff]
        %vm351 = vcmask 1046528
        %v352 = vrot.slane %v343, 1
        %v353 = vrot.slane %v344, 1
        %v354 = vsel %vm351, %v352, %v353
        %v355 = vrot.slane %v345, 1
        %v356 = vsel %vm351, %v353, %v355
        %v357 = vrot.slane %v346, 1
        %v358 = vsel %vm351, %v355, %v357
        %359 = vrot.lane.b32.xlu0 %v354, 64
        %v360 = vpop.permute.xlu0 %359
        %361 = vrot.lane.b32.xlu0 %v356, 64
        %v362 = vpop.permute.xlu0 %361
        %363 = vrot.lane.b32.xlu0 %v358, 64
        %v364 = vpop.permute.xlu0 %363
        %vm368 = vcmask 1045504
        %v369 = vrot.slane %v343, 2
        %v370 = vrot.slane %v344, 2
        %v371 = vsel %vm368, %v369, %v370
        %v372 = vrot.slane %v345, 2
        %v373 = vsel %vm368, %v370, %v372
        %v374 = vrot.slane %v346, 2
        %v375 = vsel %vm368, %v372, %v374
        %vm379 = vcmask 1044480
        %v380 = vrot.slane %v343, 3
        %v381 = vrot.slane %v344, 3
        %v382 = vsel %vm379, %v380, %v381
        %v383 = vrot.slane %v345, 3
        %v384 = vsel %vm379, %v381, %v383
        %v385 = vrot.slane %v346, 3
        %v386 = vsel %vm379, %v383, %v385
        %387 = vrot.lane.b32.xlu0 %v382, 64
        %v388 = vpop.permute.xlu0 %387
        %389 = vrot.lane.b32.xlu0 %v384, 64
        %v390 = vpop.permute.xlu0 %389
        %391 = vrot.lane.b32.xlu0 %v386, 64
        %v392 = vpop.permute.xlu0 %391
        %vm396 = vcmask 523264
        %v397 = vsel %vm396, %v343, %v360
        %v398 = vsel %vm396, %v344, %v362
        %v399 = vsel %vm396, %v345, %v364
        %v400 = vsel %vm396, %v371, %v388
        %v401 = vsel %vm396, %v373, %v390
        %v402 = vsel %vm396, %v375, %v392
        %v403 = vpack.c.bf16 %v398, %v397
        %v404 = vpack.c.bf16 %v401, %v400
        %v405 = vpack.c.bf16 %v399, %v399
        %v406 = vpack.c.bf16 %v402, %v402
        %v407 = vld [vmem:[%s2] sm:$0xff]
        %v408 = vld [vmem:[%s2 + $0x8] sm:$0xff]
        %v409 = vld [vmem:[%s2 + $0x10] sm:$0xff]
        %v410 = vld [vmem:[%s2 + $0x18] sm:$0xff]
        %v411 = vld [vmem:[%s2 + $0x20] sm:$0xff]
        %v412 = vld [vmem:[%s2 + $0x28] sm:$0xff]
        %v413 = vld [vmem:[%s2 + $0x30] sm:$0xff]
        %v414 = vld [vmem:[%s2 + $0x38] sm:$0xff]
        %v415 = vld [vmem:[%s2 + $0x40] sm:$0xff]
        %v416 = vld [vmem:[%s2 + $0x48] sm:$0xff]
        %v417 = vld [vmem:[%s2 + $0x50] sm:$0xff]
        %v418 = vld [vmem:[%s2 + $0x58] sm:$0xff]
        %v419 = vld [vmem:[%s2 + $0x60] sm:$0xff]
        %v420 = vld [vmem:[%s2 + $0x68] sm:$0xff]
        %v421 = vld [vmem:[%s2 + $0x70] sm:$0xff]
        %v422 = vld [vmem:[%s2 + $0x78] sm:$0xff]
        %v423 = vld [vmem:[%s2 + $0x80] sm:$0xff]
        %v424 = vld [vmem:[%s2 + $0x88] sm:$0xff]
        %v425 = vld [vmem:[%s2 + $0x90] sm:$0xff]
        %v426 = vld [vmem:[%s2 + $0x98] sm:$0xff]
        %v427 = vld [vmem:[%s2 + $0xa0] sm:$0xff]
        %v428 = vld [vmem:[%s2 + $0xa8] sm:$0xff]
        %v429 = vld [vmem:[%s2 + $0xb0] sm:$0xff]
        %v430 = vld [vmem:[%s2 + $0xb8] sm:$0xff]
        %v431 = vld [vmem:[%s2 + $0xc0] sm:$0xff]
        %v432 = vld [vmem:[%s2 + $0xc8] sm:$0xff]
        %v433 = vld [vmem:[%s2 + $0xd0] sm:$0xff]
        %v434 = vld [vmem:[%s2 + $0xd8] sm:$0xff]
        %v435 = vld [vmem:[%s2 + $0xe0] sm:$0xff]
        %v436 = vld [vmem:[%s2 + $0xe8] sm:$0xff]
        %v437 = vld [vmem:[%s2 + $0xf0] sm:$0xff]
        %v438 = vld [vmem:[%s2 + $0xf8] sm:$0xff]
        %v471 = vunpack.c.l.b16 %v407
        %v472 = vunpack.c.h.b16 %v407
        %v473 = vunpack.c.l.b16 %v408
        %v474 = vunpack.c.h.b16 %v408
        %v475 = vunpack.c.l.b16 %v409
        %v476 = vunpack.c.h.b16 %v409
        %v477 = vunpack.c.l.b16 %v410
        %v478 = vunpack.c.h.b16 %v410
        %v479 = vunpack.c.l.b16 %v411
        %v480 = vunpack.c.h.b16 %v411
        %v481 = vunpack.c.l.b16 %v412
        %v482 = vunpack.c.h.b16 %v412
        %v483 = vunpack.c.l.b16 %v413
        %v484 = vunpack.c.h.b16 %v413
        %v485 = vunpack.c.l.b16 %v414
        %v486 = vunpack.c.h.b16 %v414
        %v487 = vunpack.c.l.b16 %v415
        %v488 = vunpack.c.h.b16 %v415
        %v489 = vunpack.c.l.b16 %v416
        %v490 = vunpack.c.h.b16 %v416
        %v491 = vunpack.c.l.b16 %v417
        %v492 = vunpack.c.h.b16 %v417
        %v493 = vunpack.c.l.b16 %v418
        %v494 = vunpack.c.h.b16 %v418
        %v495 = vunpack.c.l.b16 %v419
        %v496 = vunpack.c.h.b16 %v419
        %v497 = vunpack.c.l.b16 %v420
        %v498 = vunpack.c.h.b16 %v420
        %v499 = vunpack.c.l.b16 %v421
        %v500 = vunpack.c.h.b16 %v421
        %v501 = vunpack.c.l.b16 %v422
        %v502 = vunpack.c.h.b16 %v422
        %v503 = vunpack.c.l.b16 %v423
        %v504 = vunpack.c.h.b16 %v423
        %v505 = vunpack.c.l.b16 %v424
        %v506 = vunpack.c.h.b16 %v424
        %v507 = vunpack.c.l.b16 %v425
        %v508 = vunpack.c.h.b16 %v425
        %v509 = vunpack.c.l.b16 %v426
        %v510 = vunpack.c.h.b16 %v426
        %v511 = vunpack.c.l.b16 %v427
        %v512 = vunpack.c.h.b16 %v427
        %v513 = vunpack.c.l.b16 %v428
        %v514 = vunpack.c.h.b16 %v428
        %v515 = vunpack.c.l.b16 %v429
        %v516 = vunpack.c.h.b16 %v429
        %v517 = vunpack.c.l.b16 %v430
        %v518 = vunpack.c.h.b16 %v430
        %v519 = vunpack.c.l.b16 %v431
        %v520 = vunpack.c.h.b16 %v431
        %v521 = vunpack.c.l.b16 %v432
        %v522 = vunpack.c.h.b16 %v432
        %v523 = vunpack.c.l.b16 %v433
        %v524 = vunpack.c.h.b16 %v433
        %v525 = vunpack.c.l.b16 %v434
        %v526 = vunpack.c.h.b16 %v434
        %v527 = vunpack.c.l.b16 %v435
        %v528 = vunpack.c.h.b16 %v435
        %v529 = vunpack.c.l.b16 %v436
        %v530 = vunpack.c.h.b16 %v436
        %v531 = vunpack.c.l.b16 %v437
        %v532 = vunpack.c.h.b16 %v437
        %v533 = vunpack.c.l.b16 %v438
        %v534 = vunpack.c.h.b16 %v438
        %v535 = vpack.c.b16 %v473, %v471
        %v536 = vpack.c.b16 %v474, %v472
        %v537 = vpack.c.b16 %v477, %v475
        %v538 = vpack.c.b16 %v478, %v476
        %v539 = vpack.c.b16 %v481, %v479
        %v540 = vpack.c.b16 %v482, %v480
        %v541 = vpack.c.b16 %v485, %v483
        %v542 = vpack.c.b16 %v486, %v484
        %v543 = vpack.c.b16 %v489, %v487
        %v544 = vpack.c.b16 %v490, %v488
        %v545 = vpack.c.b16 %v493, %v491
        %v546 = vpack.c.b16 %v494, %v492
        %v547 = vpack.c.b16 %v497, %v495
        %v548 = vpack.c.b16 %v498, %v496
        %v549 = vpack.c.b16 %v501, %v499
        %v550 = vpack.c.b16 %v502, %v500
        %v551 = vpack.c.b16 %v505, %v503
        %v552 = vpack.c.b16 %v506, %v504
        %v553 = vpack.c.b16 %v509, %v507
        %v554 = vpack.c.b16 %v510, %v508
        %v555 = vpack.c.b16 %v513, %v511
        %v556 = vpack.c.b16 %v514, %v512
        %v557 = vpack.c.b16 %v517, %v515
        %v558 = vpack.c.b16 %v518, %v516
        %v559 = vpack.c.b16 %v521, %v519
        %v560 = vpack.c.b16 %v522, %v520
        %v561 = vpack.c.b16 %v525, %v523
        %v562 = vpack.c.b16 %v526, %v524
        %v563 = vpack.c.b16 %v529, %v527
        %v564 = vpack.c.b16 %v530, %v528
        %v565 = vpack.c.b16 %v533, %v531
        %v566 = vpack.c.b16 %v534, %v532
        %599 = vmatprep.subr.bf16.mxu0 %v536
        %600 = vmatpush1.bf16.msra.mxu0 %v535
        %601 = vmatprep.subr.bf16.mxu0 %v538
        %602 = vmatpush1.bf16.msra.mxu0 %v537
        %603 = vmatprep.subr.bf16.mxu0 %v540
        %604 = vmatpush1.bf16.msra.mxu0 %v539
        %605 = vmatprep.subr.bf16.mxu0 %v542
        %606 = vmatpush1.bf16.msra.mxu0 %v541
        %607 = vmatprep.subr.bf16.mxu0 %v544
        %608 = vmatpush1.bf16.msra.mxu0 %v543
        %609 = vmatprep.subr.bf16.mxu0 %v546
        %610 = vmatpush1.bf16.msra.mxu0 %v545
        %611 = vmatprep.subr.bf16.mxu0 %v548
        %612 = vmatpush1.bf16.msra.mxu0 %v547
        %613 = vmatprep.subr.bf16.mxu0 %v550
        %614 = vmatpush1.bf16.msra.mxu0 %v549
        %615 = vmatprep.subr.bf16.mxu0 %v552
        %616 = vmatpush1.bf16.msra.mxu0 %v551
        %617 = vmatprep.subr.bf16.mxu0 %v554
        %618 = vmatpush1.bf16.msra.mxu0 %v553
        %619 = vmatprep.subr.bf16.mxu0 %v556
        %620 = vmatpush1.bf16.msra.mxu0 %v555
        %621 = vmatprep.subr.bf16.mxu0 %v558
        %622 = vmatpush1.bf16.msra.mxu0 %v557
        %623 = vmatprep.subr.bf16.mxu0 %v560
        %624 = vmatpush1.bf16.msra.mxu0 %v559
        %625 = vmatprep.subr.bf16.mxu0 %v562
        %626 = vmatpush1.bf16.msra.mxu0 %v561
        %627 = vmatprep.subr.bf16.mxu0 %v564
        %628 = vmatpush1.bf16.msra.mxu0 %v563
        %629 = vmatprep.subr.bf16.mxu0 %v566
        %630 = vmatpush1.bf16.msra.mxu0 %v565
        %631 = vmatprep.mubr.bf16.mxu0 %v404
        %632 = vmatmul.mubr.bf16.gmra.mrb[0].mxu0 %v403
        %v633 = vpop.f32.mrb[0].mxu0
        %v634 = vadd.f32 0.0, %v633
        %v635 = vpop.f32.mrb[0].mxu0
        %v636 = vadd.f32 0.0, %v635
        %v637 = vpop.f32.mrb[0].mxu0
        %v638 = vadd.f32 0.0, %v637
        %v639 = vpop.f32.mrb[0].mxu0
        %v640 = vadd.f32 0.0, %v639
        %641 = vmatprep.mubr.bf16.mxu0 %v406
        %642 = vmatmul.mubr.bf16.gmra.mrb[0].mxu0 %v405
        %v643 = vpop.f32.mrb[0].mxu0
        %v644 = vadd.f32 0.0, %v643
        %v645 = vpop.f32.mrb[0].mxu0
        %v646 = vadd.f32 0.0, %v645
        %v647 = vpop.f32.mrb[0].mxu0
        %v648 = vpop.f32.mrb[0].mxu0
        %649 = vdwg.mxu0
        %v650 = vmul.f32 %v634, %v634
        %v651 = vmul.f32 %v636, %v636
        %v652 = vmul.f32 %v638, %v638
        %v653 = vmul.f32 %v640, %v640
        %v654 = vmul.f32 %v644, %v644
        %v655 = vmul.f32 %v646, %v646
        %v656 = vadd.f32 %v650, %v651
        %v657 = vadd.f32 %v652, %v653
        %v658 = vadd.f32 %v654, %v655
        %v659 = vlaneseq
        %v660 = vand.u32 %v659, 127
        %v661 = vadd.s32 %v660, 128
        %vm662 = vcmp.eq.s32.totalorder %v660, 0
        %vm663 = vcmp.eq.s32.totalorder %v661, 0
        %vm664 = vcmp.eq.s32.totalorder %v660, 128
        %vm665 = vcmp.eq.s32.totalorder %v661, 128
        %vm666 = vmor %vm662, %vm664
        %vm667 = vmor %vm663, %vm665
        %v668 = vsel %vm666, %v650, %v656
        %v669 = vsel %vm667, %v651, %v656
        %v670 = vsel %vm666, %v652, %v657
        %v671 = vsel %vm667, %v653, %v657
        %v672 = vsel %vm666, %v654, %v658
        %v673 = vsel %vm667, %v655, %v658
        %s674 = sld [smem:[#allocation2 + %s21]]
        %v675 = vstv %s674
        %v676 = vmax.f32 %v668, %v675
        %v677 = vmax.f32 %v669, %v675
        %v678 = vmax.f32 %v670, %v675
        %v679 = vmax.f32 %v671, %v675
        %v680 = vmax.f32 %v672, %v675
        %v681 = vmax.f32 %v673, %v675
        %v682 = vld [vmem:[%s3] sm:$0x3]
        %v684 = vlaneseq
        %v685 = vshrl.u32 %v684, 7
        %v686 = vsub.s32 0, %v685
        %v687 = vrot.slane %v682, %v686
        %v688 = vlaneseq
        %v689 = vshrl.u32 %v688, 7
        %v690 = vsub.s32 1, %v689
        %v691 = vrot.slane %v682, %v690
        %v694 = vmul.f32 %v676, %v687
        %v695 = vmul.f32 %v677, %v691
        %v696 = vmul.f32 %v678, %v687
        %v697 = vmul.f32 %v679, %v691
        %v698 = vmul.f32 %v680, %v687
        %v699 = vmul.f32 %v681, %v691
        %v700 = vrsqrt.pop %v694
        %v701 = vmul.f32 %v694, %v700
        %vm702 = vcmp.eq.f32.partialorder %v694, inf
        %v703 = vsel %vm702, %v694, %v701
        %vm704 = vcmp.eq.f32.partialorder %v694, 0.0
        %v705 = vand.u32 %v694, 2147483648
        %v706 = vsel %vm704, %v705, %v703
        %v707 = vrsqrt.pop %v695
        %v708 = vmul.f32 %v695, %v707
        %vm709 = vcmp.eq.f32.partialorder %v695, inf
        %v710 = vsel %vm709, %v695, %v708
        %vm711 = vcmp.eq.f32.partialorder %v695, 0.0
        %v712 = vand.u32 %v695, 2147483648
        %v713 = vsel %vm711, %v712, %v710
        %v714 = vrsqrt.pop %v696
        %v715 = vmul.f32 %v696, %v714
        %vm716 = vcmp.eq.f32.partialorder %v696, inf
        %v717 = vsel %vm716, %v696, %v715
        %vm718 = vcmp.eq.f32.partialorder %v696, 0.0
        %v719 = vand.u32 %v696, 2147483648
        %v720 = vsel %vm718, %v719, %v717
        %v721 = vrsqrt.pop %v697
        %v722 = vmul.f32 %v697, %v721
        %vm723 = vcmp.eq.f32.partialorder %v697, inf
        %v724 = vsel %vm723, %v697, %v722
        %vm725 = vcmp.eq.f32.partialorder %v697, 0.0
        %v726 = vand.u32 %v697, 2147483648
        %v727 = vsel %vm725, %v726, %v724
        %v728 = vrsqrt.pop %v698
        %v729 = vmul.f32 %v698, %v728
        %vm730 = vcmp.eq.f32.partialorder %v698, inf
        %v731 = vsel %vm730, %v698, %v729
        %vm732 = vcmp.eq.f32.partialorder %v698, 0.0
        %v733 = vand.u32 %v698, 2147483648
        %v734 = vsel %vm732, %v733, %v731
        %v735 = vrsqrt.pop %v699
        %v736 = vmul.f32 %v699, %v735
        %vm737 = vcmp.eq.f32.partialorder %v699, inf
        %v738 = vsel %vm737, %v699, %v736
        %vm739 = vcmp.eq.f32.partialorder %v699, 0.0
        %v740 = vand.u32 %v699, 2147483648
        %v741 = vsel %vm739, %v740, %v738
        %v742 = vadd.f32 %v706, %v713
        %743 = vadd.xlane.f32.xlu0 %v742
        %v744 = vpop.xlane.xlu0 %743
        %v745 = vadd.f32 %v720, %v727
        %746 = vadd.xlane.f32.xlu0 %v745
        %v747 = vpop.xlane.xlu0 %746
        %v748 = vadd.f32 %v734, %v741
        %749 = vadd.xlane.f32.xlu0 %v748
        %v750 = vpop.xlane.xlu0 %749
        %v751 = vmul.f32 %v744, 0.007751938
        %v752 = vmul.f32 %v747, 0.007751938
        %v753 = vmul.f32 %v750, 0.007751938
        %vm754 = vcmask 7168
        %755 = vst.msk [vmem:[%s341] sm:$0xff] %vm754, %v751
        %756 = vst.msk [vmem:[%s341 + $0x8] sm:$0xff] %vm754, %v752
        %757 = vst.msk [vmem:[%s341 + $0x10] sm:$0xff] %vm754, %v753
        %s758 = smul.u32 3, %s22
        %p759 = scmp.lt.s32.totalorder %s21, 1
        %s760 = scalar_select %p759, %s21, 1
        %p761 = scmp.lt.s32.totalorder %s758, 2
        %s762 = scalar_select %p761, %s758, 2
        %s763 = smul.addr %s760, 3
        %s764 = sadd.s32 %s762, %s763
        %s765 = smul.addr %s764, 8
        %s766 = scalar_lea.vmem %s5, %s765
        // Predicated region
        $region45: #{loudness_extractor.3} parent=39 // pred_check
          %p767 = pneg %p172
        $region46: #{loudness_extractor.3} parent=39 // pred_check_branch
          %769 = sbr.rel (%p767) target = $region48
        $region47: #{loudness_extractor.3} parent=39 // pred_region
          %s770 = smul.u32 3, %s22
        $region48: #{loudness_extractor.3} parent=39 // pred_fallthru
          _
      $region40: #{loudness_extractor.3} parent=5 // pred_fallthru
        _
      %p771 = scmp.le.s32.totalorder 2, %s12
      // Predicated region
      $region49: #{loudness_extractor.3} parent=5 // pred_check
        %p772 = pneg %p771
      $region50: #{loudness_extractor.3} parent=5 // pred_check_branch
        %774 = sbr.rel (%p772) target = $region52
      $region51: #{loudness_extractor.3} parent=5 // pred_region
        %s775 = ssub.s32 %s12, 2
        // Predicated region
        $region53: #{loudness_extractor.3} parent=51 // pred_check
          %p776 = pneg %p178
        $region54: #{loudness_extractor.3} parent=51 // pred_check_branch
          %778 = sbr.rel (%p776) target = $region56
        $region55: #{loudness_extractor.3} parent=51 // pred_region
          %s779 = smul.u32 3, %s24
          %p780 = scmp.lt.s32.totalorder %s23, 1
          %s781 = scalar_select %p780, %s23, 1
          %p782 = scmp.lt.s32.totalorder %s779, 2
          %s783 = scalar_select %p782, %s779, 2
          %s784 = smul.addr %s781, 3
          %s785 = sadd.s32 %s783, %s784
          %s786 = smul.addr %s785, 8
          %s787 = scalar_lea.vmem %s5, %s786
        $region56: #{loudness_extractor.3} parent=51 // pred_fallthru
          _
      $region52: #{loudness_extractor.3} parent=5 // pred_fallthru
        _
    $region6: #{loudness_extractor.3} parent=1 // loop_footer
      %s16 = sadd.s32 1, %s12
    $region7: #{loudness_extractor.3} parent=1 // loop_footer_branch
      %11 = sbr.rel target = $region3
    $region8: #{loudness_extractor.3} parent=1 // loop_exit
      _
    %788 = vsyncpa [#allocation3], 1
    %s789 = scalar_lea.sflag [#allocation3], 1
    %790 = vsyncpa %s789, 1

</llo_original>
